<compile_context>
chip_gen: v5e
topology: v5e:2x2
jax: 0.10.0
libtpu: 0.0.40
codegen_flags: <defaults>
</compile_context>

<pallas_src>
import functools

import jax
import jax.numpy as jnp
from jax.experimental import pallas as pl
from jax.experimental.pallas import tpu as pltpu

BN_EPS = 1e-5
LANE = 128                              # TPU lane width (channel padding)


def _round_up(v, m):
    return (v + m - 1) // m * m


def _pow2_cap(v):
    """Largest power-of-two multiple of LANE that is <= max(v, LANE)."""
    p = LANE
    while p * 2 <= max(v, LANE):
        p *= 2
    return p


def _vmem_limit_bytes():
    """Generation-aware VMEM cap: v7x has 64 MiB/TC, v5e/v6e have 128 MiB."""
    try:
        kind = jax.devices()[0].device_kind.lower()
    except Exception:
        kind = ""
    if "v7" in kind:
        return 48 * 1024 * 1024
    if ("v5" in kind) or ("v6" in kind):
        return 96 * 1024 * 1024
    return 48 * 1024 * 1024             # unknown: conservative


def _pick_tiles(n, tm_max, tk_max):
    """Row tile tm, contraction tile tk (decoupled), padded node count."""
    n128 = _round_up(n, LANE)
    tm = _pow2_cap(tm_max)
    tk = _pow2_cap(tk_max)
    while tm > LANE and tm > n128:
        tm //= 2
    while tk > LANE and tk > n128:
        tk //= 2
    # Keep >= 2 row tiles when the graph allows it so the "parallel" row axis
    # can actually feed both TensorCores on v7x.
    if tm >= n128 and n128 > LANE and tm > LANE:
        tm //= 2
    n_pad = _round_up(n128, max(tm, tk))   # both tm, tk divide n_pad (pow2*128)
    return tm, tk, n_pad


# ---------------------------------------------------------------------------
# Pass 1 (per layer): [fused prev-layer BN+ReLU on load] + (A+I)@X aggregation
#                     + GIN MLP + per-row-tile partial BatchNorm statistics
# ---------------------------------------------------------------------------
def _gin_fused_kernel(a_ref, x_ref, m_ref, s_ref, g_ref, bt_ref,
                      w1_ref, b1_ref, w2_ref, b2_ref,
                      h_ref, psum_ref, psq_ref, acc_ref,
                      *, tm, tk, n_valid, apply_input_bn, x_resident,
                      mxu_dtype):
    i = pl.program_id(0)          # node-row tile        ("parallel")
    k = pl.program_id(1)          # contraction tile     ("arbitrary", last)

    @pl.when(k == 0)
    def _():
        acc_ref[...] = jnp.zeros_like(acc_ref)

    if x_resident:
        start = pl.multiple_of(k * tk, LANE)
        x_tile = x_ref[pl.ds(start, tk), :]
    else:
        x_tile = x_ref[...]

    if apply_input_bn:
        # Fused BatchNorm-apply + ReLU of the previous layer's pre-BN h.
        xf = x_tile.astype(jnp.float32)
        xf = (xf - m_ref[...]) * s_ref[...] * g_ref[...] + bt_ref[...]
        x_tile = jnp.maximum(xf, 0.0).astype(mxu_dtype)
    else:
        x_tile = x_tile.astype(mxu_dtype)

    # (A + I) @ X accumulated over K tiles; f32 accumulation on the MXU.
    # A_hat is streamed as bf16 (exact for small integer degree counts) and
    # upcast in-register when the compute dtype is f32.
    acc_ref[...] += jnp.dot(a_ref[...].astype(mxu_dtype), x_tile,
                            preferred_element_type=jnp.float32)

    @pl.when(k == pl.num_programs(1) - 1)
    def _():
        agg = acc_ref[...].astype(mxu_dtype)
        h1 = jnp.dot(agg, w1_ref[...],
                     preferred_element_type=jnp.float32) + b1_ref[...]
        h1 = jnp.maximum(h1, 0.0)
        h = jnp.dot(h1.astype(mxu_dtype), w2_ref[...],
                    preferred_element_type=jnp.float32) + b2_ref[...]
        h_ref[...] = h

        # Partial BN statistics over the *valid* (un-padded) node rows only.
        row_ids = i * tm + jax.lax.broadcasted_iota(jnp.int32, h.shape, 0)
        hv = jnp.where(row_ids < n_valid, h, 0.0)
        psum_ref[...] = jnp.sum(hv, axis=0, keepdims=True)[None]
        psq_ref[...] = jnp.sum(hv * hv, axis=0, keepdims=True)[None]


def _gin_fused_pass(a_hat, x_in, mean_in, istd_in, gamma_in, beta_in,
                    w1, b1, w2, b2, *, tm, tk, n_valid, apply_input_bn,
                    mxu_dtype, vmem_limit, x_resident_budget):
    n_pad = a_hat.shape[0]
    c_pad = x_in.shape[1]
    hid = w2.shape[1]
    grid = (n_pad // tm, n_pad // tk)

    x_bytes_one = x_in.size * x_in.dtype.itemsize
    x_resident = x_bytes_one <= x_resident_budget
    if x_resident:
        x_spec = pl.BlockSpec((n_pad, c_pad), lambda i, k: (0, 0))
    else:
        x_spec = pl.BlockSpec((tk, c_pad), lambda i, k: (k, 0))

    flops = (2 * n_pad * n_pad * c_pad
             + 2 * n_pad * c_pad * hid
             + 2 * n_pad * hid * hid)
    bytes_accessed = (n_pad * n_pad * a_hat.dtype.itemsize          # A_hat
                      + x_bytes_one * (1 if x_resident else grid[0])  # X (re)stream
                      + (w1.size + w2.size) * w1.dtype.itemsize     # weights
                      + 8 * c_pad * 4 + 8 * hid * 4                 # BN vecs/biases
                      + n_pad * hid * 4                             # h out
                      + 2 * grid[0] * hid * 4)                      # partial stats

    kernel = functools.partial(
        _gin_fused_kernel, tm=tm, tk=tk, n_valid=n_valid,
        apply_input_bn=apply_input_bn, x_resident=x_resident,
        mxu_dtype=mxu_dtype)

    return pl.pallas_call(
        kernel,
        out_shape=(jax.ShapeDtypeStruct((n_pad, hid), jnp.float32),
                   jax.ShapeDtypeStruct((grid[0], 1, hid), jnp.float32),
                   jax.ShapeDtypeStruct((grid[0], 1, hid), jnp.float32)),
        grid_spec=pltpu.PrefetchScalarGridSpec(
            num_scalar_prefetch=0,
            grid=grid,
            in_specs=[
                pl.BlockSpec((tm, tk), lambda i, k: (i, k)),      # A_hat tile (bf16)
                x_spec,                                           # X (resident/tiled)
                pl.BlockSpec((1, c_pad), lambda i, k: (0, 0)),    # prev BN mean
                pl.BlockSpec((1, c_pad), lambda i, k: (0, 0)),    # prev BN inv-std
                pl.BlockSpec((1, c_pad), lambda i, k: (0, 0)),    # prev BN gamma
                pl.BlockSpec((1, c_pad), lambda i, k: (0, 0)),    # prev BN beta
                pl.BlockSpec((c_pad, hid), lambda i, k: (0, 0)),  # W1 (resident)
                pl.BlockSpec((1, hid), lambda i, k: (0, 0)),      # b1
                pl.BlockSpec((hid, hid), lambda i, k: (0, 0)),    # W2 (resident)
                pl.BlockSpec((1, hid), lambda i, k: (0, 0)),      # b2
            ],
            out_specs=[
                pl.BlockSpec((tm, hid), lambda i, k: (i, 0)),        # h per row tile
                pl.BlockSpec((1, 1, hid), lambda i, k: (i, 0, 0)),   # partial sum
                pl.BlockSpec((1, 1, hid), lambda i, k: (i, 0, 0)),   # partial sum-sq
            ],
            scratch_shapes=[pltpu.VMEM((tm, c_pad), jnp.float32)],
        ),
        compiler_params=pltpu.CompilerParams(
            dimension_semantics=("parallel", "arbitrary"),
            vmem_limit_bytes=vmem_limit),
        cost_estimate=pl.CostEstimate(flops=flops, transcendentals=0,
                                      bytes_accessed=bytes_accessed),
    )(a_hat, x_in, mean_in, istd_in, gamma_in, beta_in, w1, b1, w2, b2)


# ---------------------------------------------------------------------------
# Final BatchNorm apply + ReLU (only needed after the last layer; intermediate
# layers get this fused into the next layer's pass 1).
# ---------------------------------------------------------------------------
def _bn_relu_kernel(h_ref, mean_ref, istd_ref, gamma_ref, beta_ref, o_ref):
    y = ((h_ref[...] - mean_ref[...]) * istd_ref[...] * gamma_ref[...]
         + beta_ref[...])
    o_ref[...] = jnp.maximum(y, 0.0).astype(o_ref.dtype)


def _bn_relu_pass(h, mean, istd, gamma, beta, *, tm, vmem_limit):
    n_pad, hid = h.shape
    return pl.pallas_call(
        _bn_relu_kernel,
        out_shape=jax.ShapeDtypeStruct((n_pad, hid), jnp.float32),
        grid_spec=pltpu.PrefetchScalarGridSpec(
            num_scalar_prefetch=0,
            grid=(n_pad // tm,),
            in_specs=[
                pl.BlockSpec((tm, hid), lambda i: (i, 0)),
                pl.BlockSpec((1, hid), lambda i: (0, 0)),
                pl.BlockSpec((1, hid), lambda i: (0, 0)),
                pl.BlockSpec((1, hid), lambda i: (0, 0)),
                pl.BlockSpec((1, hid), lambda i: (0, 0)),
            ],
            out_specs=pl.BlockSpec((tm, hid), lambda i: (i, 0)),
        ),
        compiler_params=pltpu.CompilerParams(
            dimension_semantics=("parallel",),
            vmem_limit_bytes=vmem_limit),
    )(h, mean, istd, gamma, beta)


# ---------------------------------------------------------------------------
# Glue: padded (A + I) build (directly in streaming dtype), params, forward
# ---------------------------------------------------------------------------
def build_a_hat_padded(edge_index, num_nodes, n_pad, dtype=jnp.bfloat16):
    """Dense padded (A + I) built directly in the streaming dtype.

    A[i, j] = number of edges j -> i; the identity is added only for valid
    nodes so the padded rows/columns stay exactly zero (that zero-pad
    invariant is what makes padded-node rows harmless downstream).  Degree
    counts <= 255 are exact in bf16.
    """
    src, dst = edge_index[0], edge_index[1]
    a = jnp.zeros((n_pad, n_pad), dtype)
    a = a.at[dst, src].add(jnp.ones(src.shape, dtype))
    node = jnp.arange(num_nodes, dtype=jnp.int32)
    a = a.at[node, node].add(jnp.ones((num_nodes,), dtype))
    return a


def init_gin_params(key, in_channels, hidden_channels, num_layers=3):
    params = []
    for i in range(num_layers):
        cin = in_channels if i == 0 else hidden_channels
        key, k1, k2, k3, k4 = jax.random.split(key, 5)
        w1 = (jax.random.normal(k1, (cin, hidden_channels), jnp.float32)
              / jnp.sqrt(float(cin)))
        b1 = 0.01 * jax.random.normal(k2, (1, hidden_channels), jnp.float32)
        w2 = (jax.random.normal(k3, (hidden_channels, hidden_channels),
                                jnp.float32)
              / jnp.sqrt(float(hidden_channels)))
        b2 = 0.01 * jax.random.normal(k4, (1, hidden_channels), jnp.float32)
        gamma = jnp.ones((1, hidden_channels), jnp.float32)
        beta = jnp.zeros((1, hidden_channels), jnp.float32)
        params.append((w1, b1, w2, b2, gamma, beta))
    return params


@functools.partial(jax.jit, static_argnums=(3, 4, 5, 6))
def gin_forward(x, edge_index, params_flat, mxu_dtype=jnp.float32,
                tm_max=1024, tk_max=512, force_stream_x=False):
    """sub_graph=False forward path of the PyTorch GIN module."""
    n, cin = x.shape
    hid = params_flat[0].shape[1]
    num_layers = len(params_flat) // 6

    cin_pad = _round_up(cin, LANE)
    hid_pad = _round_up(hid, LANE)
    tm, tk, n_pad = _pick_tiles(n, tm_max, tk_max)

    vmem_limit = _vmem_limit_bytes()
    # Budget for a fully VMEM-resident X (leave room for double-buffered A
    # tiles, weights and the accumulator); 0 forces the streamed-X path.
    x_budget = 0 if force_stream_x else vmem_limit // 3

    # A_hat streamed in bf16 regardless of mxu_dtype (exact small-int degrees).
    a_hat = build_a_hat_padded(edge_index, n, n_pad, dtype=jnp.bfloat16)
    xp = jnp.pad(x, ((0, n_pad - n), (0, cin_pad - cin))).astype(mxu_dtype)

    # Layer 0 has no fused input BN; pass dummy (unused) vectors.
    zeros_c = jnp.zeros((1, cin_pad), jnp.float32)
    x_in = xp
    bn_in = (zeros_c, zeros_c, zeros_c, zeros_c)
    apply_input_bn = False

    for li in range(num_layers):
        w1, b1, w2, b2, gamma, beta = params_flat[6 * li: 6 * (li + 1)]
        ci_pad = cin_pad if li == 0 else hid_pad
        w1p = jnp.pad(w1, ((0, ci_pad - w1.shape[0]),
                           (0, hid_pad - hid))).astype(mxu_dtype)
        w2p = jnp.pad(w2, ((0, hid_pad - hid),
                           (0, hid_pad - hid))).astype(mxu_dtype)
        b1p = jnp.pad(b1, ((0, 0), (0, hid_pad - hid)))
        b2p = jnp.pad(b2, ((0, 0), (0, hid_pad - hid)))
        gp = jnp.pad(gamma, ((0, 0), (0, hid_pad - hid)))
        bp = jnp.pad(beta, ((0, 0), (0, hid_pad - hid)))

        h, psum, psq = _gin_fused_pass(
            a_hat, x_in, *bn_in, w1p, b1p, w2p, b2p,
            tm=tm, tk=tk, n_valid=n, apply_input_bn=apply_input_bn,
            mxu_dtype=mxu_dtype, vmem_limit=vmem_limit,
            x_resident_budget=x_budget)

        # Combine per-row-tile partial sums (tiny glue) into batch statistics
        # over the true (un-padded) node count.
        total_sum = jnp.sum(psum[:, 0, :], axis=0, keepdims=True)
        total_sq = jnp.sum(psq[:, 0, :], axis=0, keepdims=True)
        mean = total_sum / n
        var = jnp.maximum(total_sq / n - mean * mean, 0.0)
        istd = jax.lax.rsqrt(var + BN_EPS)

        # The BN apply + ReLU for this layer is fused into the NEXT layer's
        # pass-1 kernel (normalize-on-load); only the last layer needs the
        # standalone apply pass below.
        x_in = h
        bn_in = (mean, istd, gp, bp)
        apply_input_bn = True

    out = _bn_relu_pass(x_in, *bn_in, tm=tm, vmem_limit=vmem_limit)
    return out[:n, :hid]


# ---------------------------------------------------------------------------
# Pure-JAX mirror (same dtype handling as the kernels) for checking
# ---------------------------------------------------------------------------
def _reference_forward(x, edge_index, params, mxu_dtype=jnp.float32):
    n = x.shape[0]
    num_layers = len(params)
    a = jnp.zeros((n, n), jnp.float32).at[edge_index[1], edge_index[0]].add(1.0)
    a_hat = (a + jnp.eye(n, dtype=jnp.float32)).astype(mxu_dtype)
    xr = x.astype(mxu_dtype)
    for li, (w1, b1, w2, b2, gamma, beta) in enumerate(params):
        agg = jnp.dot(a_hat, xr, preferred_element_type=jnp.float32)
        h = jnp.dot(agg.astype(mxu_dtype), w1.astype(mxu_dtype),
                    preferred_element_type=jnp.float32) + b1
        h = jnp.maximum(h, 0.0)
        h = jnp.dot(h.astype(mxu_dtype), w2.astype(mxu_dtype),
                    preferred_element_type=jnp.float32) + b2
        mean = jnp.mean(h, axis=0, keepdims=True)
        var = jnp.mean((h - mean) ** 2, axis=0, keepdims=True)
        y = (h - mean) * jax.lax.rsqrt(var + BN_EPS) * gamma + beta
        y = jnp.maximum(y, 0.0)
        xr = y if li == num_layers - 1 else y.astype(mxu_dtype)
    return xr.astype(jnp.float32)


def _make_graph(num_nodes):
    """Deterministic graph: bidirectional ring + two chords (needs N >= 12)."""
    src = jnp.arange(num_nodes, dtype=jnp.int32)
    dst = (src + 1) % num_nodes
    return jnp.concatenate(
        [jnp.stack([src, dst]),
         jnp.stack([dst, src]),
         jnp.array([[0, 3], [8, 11]], jnp.int32)], axis=1)


if __name__ == "__main__":
    key = jax.random.PRNGKey(0)
    in_channels, hidden_channels, num_layers = 8, 32, 3

    checks = [
        # (num_nodes, mxu_dtype,   tm_max, tk_max, force_stream_x, tolerance)
        (16,  jnp.float32,  1024, 512, False, 2e-3),   # single-tile path
        (200, jnp.float32,   256, 128, False, 2e-3),   # multi-tile, resident X
        (200, jnp.float32,   256, 128, True,  2e-3),   # streamed-X code path
        (200, jnp.bfloat16,  512, 256, False, 2e-2),   # bf16 MXU operands
    ]

    for num_nodes, mxu_dtype, tm_max, tk_max, stream_x, tol in checks:
        key, kx, kp = jax.random.split(key, 3)
        x = jax.random.normal(kx, (num_nodes, in_channels), jnp.float32)
        edge_index = _make_graph(num_nodes)
        params = init_gin_params(kp, in_channels, hidden_channels, num_layers)
        params_flat = tuple(p for layer in params for p in layer)

        out = gin_forward(x, edge_index, params_flat, mxu_dtype,
                          tm_max, tk_max, stream_x)
        out = jax.block_until_ready(out)
        assert out.shape == (num_nodes, hidden_channels)

        ref = _reference_forward(x, edge_index, params, mxu_dtype)
        assert jnp.allclose(out, ref, atol=tol, rtol=tol), (
            f"mismatch vs reference (N={num_nodes}, dtype={mxu_dtype.__name__},"
            f" tm_max={tm_max}, tk_max={tk_max}, stream_x={stream_x})")

    print("KERNEL_OK")
</pallas_src>

<mosaic_0001>
module attributes {stable_mosaic.version = 11 : i64} {
  func.func @_gin_fused_kernel(%arg0: i32, %arg1: i32, %arg2: memref<128x128xbf16, #tpu.memory_space<vmem>>, %arg3: memref<128x128xf32, #tpu.memory_space<vmem>>, %arg4: memref<1x128xf32, #tpu.memory_space<vmem>>, %arg5: memref<1x128xf32, #tpu.memory_space<vmem>>, %arg6: memref<1x128xf32, #tpu.memory_space<vmem>>, %arg7: memref<1x128xf32, #tpu.memory_space<vmem>>, %arg8: memref<128x128xf32, #tpu.memory_space<vmem>>, %arg9: memref<1x128xf32, #tpu.memory_space<vmem>>, %arg10: memref<128x128xf32, #tpu.memory_space<vmem>>, %arg11: memref<1x128xf32, #tpu.memory_space<vmem>>, %arg12: memref<128x128xf32, #tpu.memory_space<vmem>>, %arg13: memref<1x1x128xf32, #tpu.memory_space<vmem>>, %arg14: memref<1x1x128xf32, #tpu.memory_space<vmem>>, %arg15: memref<128x128xf32, #tpu.memory_space<vmem>>) attributes {dimension_semantics = [#tpu.dimension_semantics<parallel>, #tpu.dimension_semantics<arbitrary>], iteration_bounds = array<i64: 1, 1>, scalar_prefetch = 0 : i64, scratch_operands = 1 : i64, tpu.core_type = #tpu.core_type<tc>, window_params = [{transform_indices = @transform_0, window_bounds = array<i64: 128, 128>}, {pipeline_mode = #tpu.pipeline_mode<synchronous>, transform_indices = @transform_1, window_bounds = array<i64: 128, 128>}, {pipeline_mode = #tpu.pipeline_mode<synchronous>, transform_indices = @transform_2, window_bounds = array<i64: 1, 128>}, {pipeline_mode = #tpu.pipeline_mode<synchronous>, transform_indices = @transform_3, window_bounds = array<i64: 1, 128>}, {pipeline_mode = #tpu.pipeline_mode<synchronous>, transform_indices = @transform_4, window_bounds = array<i64: 1, 128>}, {pipeline_mode = #tpu.pipeline_mode<synchronous>, transform_indices = @transform_5, window_bounds = array<i64: 1, 128>}, {pipeline_mode = #tpu.pipeline_mode<synchronous>, transform_indices = @transform_6, window_bounds = array<i64: 128, 128>}, {pipeline_mode = #tpu.pipeline_mode<synchronous>, transform_indices = @transform_7, window_bounds = array<i64: 1, 128>}, {pipeline_mode = #tpu.pipeline_mode<synchronous>, transform_indices = @transform_8, window_bounds = array<i64: 128, 128>}, {pipeline_mode = #tpu.pipeline_mode<synchronous>, transform_indices = @transform_9, window_bounds = array<i64: 1, 128>}, {transform_indices = @transform_10, window_bounds = array<i64: 128, 128>}, {transform_indices = @transform_11, window_bounds = array<i64: 1, 1, 128>}, {transform_indices = @transform_12, window_bounds = array<i64: 1, 1, 128>}]} {
    %c0_i32 = arith.constant 0 : i32
    %0 = arith.cmpi eq, %arg1, %c0_i32 : i32
    %1 = arith.extui %0 : i1 to i32
    %c0_i32_0 = arith.constant 0 : i32
    %2 = arith.cmpi ne, %1, %c0_i32_0 : i32
    scf.if %2 {
      %cst_9 = arith.constant 0.000000e+00 : f32
      %16 = vector.broadcast %cst_9 : f32 to vector<128x128xf32>
      %c0_10 = arith.constant 0 : index
      %c0_11 = arith.constant 0 : index
      %17 = vector.load %arg15[%c0_10, %c0_11] : memref<128x128xf32, #tpu.memory_space<vmem>>, vector<128x128xf32>
      tpu.vector_store %arg15[%c0_10, %c0_11], %16 {strides = array<i32>} : memref<128x128xf32, #tpu.memory_space<vmem>>, vector<128x128xf32>,
    } else {
    }
    %c128_i32 = arith.constant 128 : i32
    %3 = arith.muli %arg1, %c128_i32 : i32
    %4 = tpu.assume_multiple %3, 128 : i32
    %5 = arith.index_cast %4 : i32 to index
    %c0 = arith.constant 0 : index
    %6 = vector.load %arg3[%5, %c0] : memref<128x128xf32, #tpu.memory_space<vmem>>, vector<128x128xf32>
    %c0_1 = arith.constant 0 : index
    %c0_2 = arith.constant 0 : index
    %7 = vector.load %arg15[%c0_1, %c0_2] : memref<128x128xf32, #tpu.memory_space<vmem>>, vector<128x128xf32>
    %c0_3 = arith.constant 0 : index
    %c0_4 = arith.constant 0 : index
    %8 = vector.load %arg2[%c0_3, %c0_4] : memref<128x128xbf16, #tpu.memory_space<vmem>>, vector<128x128xbf16>
    %9 = arith.extf %8 : vector<128x128xbf16> to vector<128x128xf32>
    %cst = arith.constant dense<0.000000e+00> : vector<128x128xf32>
    %10 = tpu.matmul %9, %6, %cst {dimension_numbers = #tpu.dot_dimension_numbers<[1], [0], [0], [1], [0, 0, 1, 1], [], []>} : vector<128x128xf32>, vector<128x128xf32>, vector<128x128xf32> -> vector<128x128xf32>
    %11 = arith.addf %7, %10 : vector<128x128xf32>
    %c0_5 = arith.constant 0 : index
    %c0_6 = arith.constant 0 : index
    %12 = vector.load %arg15[%c0_5, %c0_6] : memref<128x128xf32, #tpu.memory_space<vmem>>, vector<128x128xf32>
    tpu.vector_store %arg15[%c0_5, %c0_6], %11 {strides = array<i32>} : memref<128x128xf32, #tpu.memory_space<vmem>>, vector<128x128xf32>,
    %c0_i32_7 = arith.constant 0 : i32
    %13 = arith.cmpi eq, %arg1, %c0_i32_7 : i32
    %14 = arith.extui %13 : i1 to i32
    %c0_i32_8 = arith.constant 0 : i32
    %15 = arith.cmpi ne, %14, %c0_i32_8 : i32
    scf.if %15 {
      %c0_9 = arith.constant 0 : index
      %c0_10 = arith.constant 0 : index
      %16 = vector.load %arg15[%c0_9, %c0_10] : memref<128x128xf32, #tpu.memory_space<vmem>>, vector<128x128xf32>
      %c0_11 = arith.constant 0 : index
      %c0_12 = arith.constant 0 : index
      %17 = vector.load %arg8[%c0_11, %c0_12] : memref<128x128xf32, #tpu.memory_space<vmem>>, vector<128x128xf32>
      %cst_13 = arith.constant dense<0.000000e+00> : vector<128x128xf32>
      %18 = tpu.matmul %16, %17, %cst_13 {dimension_numbers = #tpu.dot_dimension_numbers<[1], [0], [0], [1], [0, 0, 1, 1], [], []>} : vector<128x128xf32>, vector<128x128xf32>, vector<128x128xf32> -> vector<128x128xf32>
      %c0_14 = arith.constant 0 : index
      %c0_15 = arith.constant 0 : index
      %19 = vector.load %arg9[%c0_14, %c0_15] : memref<1x128xf32, #tpu.memory_space<vmem>>, vector<1x128xf32>
      %20 = vector.broadcast %19 : vector<1x128xf32> to vector<128x128xf32>
      %21 = arith.addf %18, %20 : vector<128x128xf32>
      %cst_16 = arith.constant 0.000000e+00 : f32
      %22 = vector.broadcast %cst_16 : f32 to vector<128x128xf32>
      %23 = arith.maximumf %21, %22 : vector<128x128xf32>
      %c0_17 = arith.constant 0 : index
      %c0_18 = arith.constant 0 : index
      %24 = vector.load %arg10[%c0_17, %c0_18] : memref<128x128xf32, #tpu.memory_space<vmem>>, vector<128x128xf32>
      %cst_19 = arith.constant dense<0.000000e+00> : vector<128x128xf32>
      %25 = tpu.matmul %23, %24, %cst_19 {dimension_numbers = #tpu.dot_dimension_numbers<[1], [0], [0], [1], [0, 0, 1, 1], [], []>} : vector<128x128xf32>, vector<128x128xf32>, vector<128x128xf32> -> vector<128x128xf32>
      %c0_20 = arith.constant 0 : index
      %c0_21 = arith.constant 0 : index
      %26 = vector.load %arg11[%c0_20, %c0_21] : memref<1x128xf32, #tpu.memory_space<vmem>>, vector<1x128xf32>
      %27 = vector.broadcast %26 : vector<1x128xf32> to vector<128x128xf32>
      %28 = arith.addf %25, %27 : vector<128x128xf32>
      %c0_22 = arith.constant 0 : index
      %c0_23 = arith.constant 0 : index
      %29 = vector.load %arg12[%c0_22, %c0_23] : memref<128x128xf32, #tpu.memory_space<vmem>>, vector<128x128xf32>
      tpu.vector_store %arg12[%c0_22, %c0_23], %28 {strides = array<i32>} : memref<128x128xf32, #tpu.memory_space<vmem>>, vector<128x128xf32>,
      %c128_i32_24 = arith.constant 128 : i32
      %30 = arith.muli %arg0, %c128_i32_24 : i32
      %31 = tpu.iota {dimensions = array<i32: 0>} : vector<128x128xi32>
      %32 = vector.broadcast %30 : i32 to vector<128x128xi32>
      %33 = arith.addi %32, %31 : vector<128x128xi32>
      %c16_i32 = arith.constant 16 : i32
      %34 = vector.broadcast %c16_i32 : i32 to vector<128x128xi32>
      %35 = arith.cmpi slt, %33, %34 : vector<128x128xi32>
      %cst_25 = arith.constant 0.000000e+00 : f32
      %36 = vector.broadcast %cst_25 : f32 to vector<128x128xf32>
      %37 = arith.select %35, %28, %36 : vector<128x128xi1>, vector<128x128xf32>
      %cst_26 = arith.constant dense<0.000000e+00> : vector<128xf32>
      %38 = vector.multi_reduction <add>, %37, %cst_26 [0] : vector<128x128xf32> to vector<128xf32>
      %39 = vector.shape_cast %38 : vector<128xf32> to vector<1x128xf32>
      %40 = vector.shape_cast %39 : vector<1x128xf32> to vector<1x1x128xf32>
      %c0_27 = arith.constant 0 : index
      %c0_28 = arith.constant 0 : index
      %c0_29 = arith.constant 0 : index
      %41 = vector.load %arg13[%c0_27, %c0_28, %c0_29] : memref<1x1x128xf32, #tpu.memory_space<vmem>>, vector<1x1x128xf32>
      tpu.vector_store %arg13[%c0_27, %c0_28, %c0_29], %40 {strides = array<i32>} : memref<1x1x128xf32, #tpu.memory_space<vmem>>, vector<1x1x128xf32>,
      %42 = arith.mulf %37, %37 : vector<128x128xf32>
      %cst_30 = arith.constant dense<0.000000e+00> : vector<128xf32>
      %43 = vector.multi_reduction <add>, %42, %cst_30 [0] : vector<128x128xf32> to vector<128xf32>
      %44 = vector.shape_cast %43 : vector<128xf32> to vector<1x128xf32>
      %45 = vector.shape_cast %44 : vector<1x128xf32> to vector<1x1x128xf32>
      %c0_31 = arith.constant 0 : index
      %c0_32 = arith.constant 0 : index
      %c0_33 = arith.constant 0 : index
      %46 = vector.load %arg14[%c0_31, %c0_32, %c0_33] : memref<1x1x128xf32, #tpu.memory_space<vmem>>, vector<1x1x128xf32>
      tpu.vector_store %arg14[%c0_31, %c0_32, %c0_33], %45 {strides = array<i32>} : memref<1x1x128xf32, #tpu.memory_space<vmem>>, vector<1x1x128xf32>,
    } else {
    }
    return
  }
  func.func @transform_0(%arg0: i32, %arg1: i32) -> (i32, i32) {
    %c0_i32 = arith.constant 0 : i32
    return %arg0, %arg1 : i32, i32
  }
  func.func @transform_1(%arg0: i32, %arg1: i32) -> (i32, i32) {
    %c0_i32 = arith.constant 0 : i32
    %c0_i32_0 = arith.constant 0 : i32
    %c0_i32_1 = arith.constant 0 : i32
    return %c0_i32, %c0_i32_0 : i32, i32
  }
  func.func @transform_2(%arg0: i32, %arg1: i32) -> (i32, i32) {
    %c0_i32 = arith.constant 0 : i32
    %c0_i32_0 = arith.constant 0 : i32
    %c0_i32_1 = arith.constant 0 : i32
    return %c0_i32, %c0_i32_0 : i32, i32
  }
  func.func @transform_3(%arg0: i32, %arg1: i32) -> (i32, i32) {
    %c0_i32 = arith.constant 0 : i32
    %c0_i32_0 = arith.constant 0 : i32
    %c0_i32_1 = arith.constant 0 : i32
    return %c0_i32, %c0_i32_0 : i32, i32
  }
  func.func @transform_4(%arg0: i32, %arg1: i32) -> (i32, i32) {
    %c0_i32 = arith.constant 0 : i32
    %c0_i32_0 = arith.constant 0 : i32
    %c0_i32_1 = arith.constant 0 : i32
    return %c0_i32, %c0_i32_0 : i32, i32
  }
  func.func @transform_5(%arg0: i32, %arg1: i32) -> (i32, i32) {
    %c0_i32 = arith.constant 0 : i32
    %c0_i32_0 = arith.constant 0 : i32
    %c0_i32_1 = arith.constant 0 : i32
    return %c0_i32, %c0_i32_0 : i32, i32
  }
  func.func @transform_6(%arg0: i32, %arg1: i32) -> (i32, i32) {
    %c0_i32 = arith.constant 0 : i32
    %c0_i32_0 = arith.constant 0 : i32
    %c0_i32_1 = arith.constant 0 : i32
    return %c0_i32, %c0_i32_0 : i32, i32
  }
  func.func @transform_7(%arg0: i32, %arg1: i32) -> (i32, i32) {
    %c0_i32 = arith.constant 0 : i32
    %c0_i32_0 = arith.constant 0 : i32
    %c0_i32_1 = arith.constant 0 : i32
    return %c0_i32, %c0_i32_0 : i32, i32
  }
  func.func @transform_8(%arg0: i32, %arg1: i32) -> (i32, i32) {
    %c0_i32 = arith.constant 0 : i32
    %c0_i32_0 = arith.constant 0 : i32
    %c0_i32_1 = arith.constant 0 : i32
    return %c0_i32, %c0_i32_0 : i32, i32
  }
  func.func @transform_9(%arg0: i32, %arg1: i32) -> (i32, i32) {
    %c0_i32 = arith.constant 0 : i32
    %c0_i32_0 = arith.constant 0 : i32
    %c0_i32_1 = arith.constant 0 : i32
    return %c0_i32, %c0_i32_0 : i32, i32
  }
  func.func @transform_10(%arg0: i32, %arg1: i32) -> (i32, i32) {
    %c0_i32 = arith.constant 0 : i32
    %c0_i32_0 = arith.constant 0 : i32
    return %arg0, %c0_i32 : i32, i32
  }
  func.func @transform_11(%arg0: i32, %arg1: i32) -> (i32, i32, i32) {
    %c0_i32 = arith.constant 0 : i32
    %c0_i32_0 = arith.constant 0 : i32
    %c0_i32_1 = arith.constant 0 : i32
    return %arg0, %c0_i32, %c0_i32_0 : i32, i32, i32
  }
  func.func @transform_12(%arg0: i32, %arg1: i32) -> (i32, i32, i32) {
    %c0_i32 = arith.constant 0 : i32
    %c0_i32_0 = arith.constant 0 : i32
    %c0_i32_1 = arith.constant 0 : i32
    return %arg0, %c0_i32, %c0_i32_0 : i32, i32, i32
  }
}

module attributes {stable_mosaic.version = 11 : i64} {
  func.func @_gin_fused_kernel(%arg0: i32, %arg1: i32, %arg2: memref<128x128xbf16, #tpu.memory_space<vmem>>, %arg3: memref<128x128xf32, #tpu.memory_space<vmem>>, %arg4: memref<1x128xf32, #tpu.memory_space<vmem>>, %arg5: memref<1x128xf32, #tpu.memory_space<vmem>>, %arg6: memref<1x128xf32, #tpu.memory_space<vmem>>, %arg7: memref<1x128xf32, #tpu.memory_space<vmem>>, %arg8: memref<128x128xf32, #tpu.memory_space<vmem>>, %arg9: memref<1x128xf32, #tpu.memory_space<vmem>>, %arg10: memref<128x128xf32, #tpu.memory_space<vmem>>, %arg11: memref<1x128xf32, #tpu.memory_space<vmem>>, %arg12: memref<128x128xf32, #tpu.memory_space<vmem>>, %arg13: memref<1x1x128xf32, #tpu.memory_space<vmem>>, %arg14: memref<1x1x128xf32, #tpu.memory_space<vmem>>, %arg15: memref<128x128xf32, #tpu.memory_space<vmem>>) attributes {dimension_semantics = [#tpu.dimension_semantics<parallel>, #tpu.dimension_semantics<arbitrary>], iteration_bounds = array<i64: 1, 1>, scalar_prefetch = 0 : i64, scratch_operands = 1 : i64, tpu.core_type = #tpu.core_type<tc>, window_params = [{transform_indices = @transform_0, window_bounds = array<i64: 128, 128>}, {pipeline_mode = #tpu.pipeline_mode<synchronous>, transform_indices = @transform_1, window_bounds = array<i64: 128, 128>}, {pipeline_mode = #tpu.pipeline_mode<synchronous>, transform_indices = @transform_2, window_bounds = array<i64: 1, 128>}, {pipeline_mode = #tpu.pipeline_mode<synchronous>, transform_indices = @transform_3, window_bounds = array<i64: 1, 128>}, {pipeline_mode = #tpu.pipeline_mode<synchronous>, transform_indices = @transform_4, window_bounds = array<i64: 1, 128>}, {pipeline_mode = #tpu.pipeline_mode<synchronous>, transform_indices = @transform_5, window_bounds = array<i64: 1, 128>}, {pipeline_mode = #tpu.pipeline_mode<synchronous>, transform_indices = @transform_6, window_bounds = array<i64: 128, 128>}, {pipeline_mode = #tpu.pipeline_mode<synchronous>, transform_indices = @transform_7, window_bounds = array<i64: 1, 128>}, {pipeline_mode = #tpu.pipeline_mode<synchronous>, transform_indices = @transform_8, window_bounds = array<i64: 128, 128>}, {pipeline_mode = #tpu.pipeline_mode<synchronous>, transform_indices = @transform_9, window_bounds = array<i64: 1, 128>}, {transform_indices = @transform_10, window_bounds = array<i64: 128, 128>}, {transform_indices = @transform_11, window_bounds = array<i64: 1, 1, 128>}, {transform_indices = @transform_12, window_bounds = array<i64: 1, 1, 128>}]} {
    %c0_i32 = arith.constant 0 : i32
    %0 = arith.cmpi eq, %arg1, %c0_i32 : i32
    %1 = arith.extui %0 : i1 to i32
    %c0_i32_0 = arith.constant 0 : i32
    %2 = arith.cmpi ne, %1, %c0_i32_0 : i32
    scf.if %2 {
      %cst_18 = arith.constant 0.000000e+00 : f32
      %30 = vector.broadcast %cst_18 : f32 to vector<128x128xf32>
      %c0_19 = arith.constant 0 : index
      %c0_20 = arith.constant 0 : index
      %31 = vector.load %arg15[%c0_19, %c0_20] : memref<128x128xf32, #tpu.memory_space<vmem>>, vector<128x128xf32>
      tpu.vector_store %arg15[%c0_19, %c0_20], %30 {strides = array<i32>} : memref<128x128xf32, #tpu.memory_space<vmem>>, vector<128x128xf32>,
    } else {
    }
    %c128_i32 = arith.constant 128 : i32
    %3 = arith.muli %arg1, %c128_i32 : i32
    %4 = tpu.assume_multiple %3, 128 : i32
    %5 = arith.index_cast %4 : i32 to index
    %c0 = arith.constant 0 : index
    %6 = vector.load %arg3[%5, %c0] : memref<128x128xf32, #tpu.memory_space<vmem>>, vector<128x128xf32>
    %c0_1 = arith.constant 0 : index
    %c0_2 = arith.constant 0 : index
    %7 = vector.load %arg4[%c0_1, %c0_2] : memref<1x128xf32, #tpu.memory_space<vmem>>, vector<1x128xf32>
    %8 = vector.broadcast %7 : vector<1x128xf32> to vector<128x128xf32>
    %9 = arith.subf %6, %8 : vector<128x128xf32>
    %c0_3 = arith.constant 0 : index
    %c0_4 = arith.constant 0 : index
    %10 = vector.load %arg5[%c0_3, %c0_4] : memref<1x128xf32, #tpu.memory_space<vmem>>, vector<1x128xf32>
    %11 = vector.broadcast %10 : vector<1x128xf32> to vector<128x128xf32>
    %12 = arith.mulf %9, %11 : vector<128x128xf32>
    %c0_5 = arith.constant 0 : index
    %c0_6 = arith.constant 0 : index
    %13 = vector.load %arg6[%c0_5, %c0_6] : memref<1x128xf32, #tpu.memory_space<vmem>>, vector<1x128xf32>
    %14 = vector.broadcast %13 : vector<1x128xf32> to vector<128x128xf32>
    %15 = arith.mulf %12, %14 : vector<128x128xf32>
    %c0_7 = arith.constant 0 : index
    %c0_8 = arith.constant 0 : index
    %16 = vector.load %arg7[%c0_7, %c0_8] : memref<1x128xf32, #tpu.memory_space<vmem>>, vector<1x128xf32>
    %17 = vector.broadcast %16 : vector<1x128xf32> to vector<128x128xf32>
    %18 = arith.addf %15, %17 : vector<128x128xf32>
    %cst = arith.constant 0.000000e+00 : f32
    %19 = vector.broadcast %cst : f32 to vector<128x128xf32>
    %20 = arith.maximumf %18, %19 : vector<128x128xf32>
    %c0_9 = arith.constant 0 : index
    %c0_10 = arith.constant 0 : index
    %21 = vector.load %arg15[%c0_9, %c0_10] : memref<128x128xf32, #tpu.memory_space<vmem>>, vector<128x128xf32>
    %c0_11 = arith.constant 0 : index
    %c0_12 = arith.constant 0 : index
    %22 = vector.load %arg2[%c0_11, %c0_12] : memref<128x128xbf16, #tpu.memory_space<vmem>>, vector<128x128xbf16>
    %23 = arith.extf %22 : vector<128x128xbf16> to vector<128x128xf32>
    %cst_13 = arith.constant dense<0.000000e+00> : vector<128x128xf32>
    %24 = tpu.matmul %23, %20, %cst_13 {dimension_numbers = #tpu.dot_dimension_numbers<[1], [0], [0], [1], [0, 0, 1, 1], [], []>} : vector<128x128xf32>, vector<128x128xf32>, vector<128x128xf32> -> vector<128x128xf32>
    %25 = arith.addf %21, %24 : vector<128x128xf32>
    %c0_14 = arith.constant 0 : index
    %c0_15 = arith.constant 0 : index
    %26 = vector.load %arg15[%c0_14, %c0_15] : memref<128x128xf32, #tpu.memory_space<vmem>>, vector<128x128xf32>
    tpu.vector_store %arg15[%c0_14, %c0_15], %25 {strides = array<i32>} : memref<128x128xf32, #tpu.memory_space<vmem>>, vector<128x128xf32>,
    %c0_i32_16 = arith.constant 0 : i32
    %27 = arith.cmpi eq, %arg1, %c0_i32_16 : i32
    %28 = arith.extui %27 : i1 to i32
    %c0_i32_17 = arith.constant 0 : i32
    %29 = arith.cmpi ne, %28, %c0_i32_17 : i32
    scf.if %29 {
      %c0_18 = arith.constant 0 : index
      %c0_19 = arith.constant 0 : index
      %30 = vector.load %arg15[%c0_18, %c0_19] : memref<128x128xf32, #tpu.memory_space<vmem>>, vector<128x128xf32>
      %c0_20 = arith.constant 0 : index
      %c0_21 = arith.constant 0 : index
      %31 = vector.load %arg8[%c0_20, %c0_21] : memref<128x128xf32, #tpu.memory_space<vmem>>, vector<128x128xf32>
      %cst_22 = arith.constant dense<0.000000e+00> : vector<128x128xf32>
      %32 = tpu.matmul %30, %31, %cst_22 {dimension_numbers = #tpu.dot_dimension_numbers<[1], [0], [0], [1], [0, 0, 1, 1], [], []>} : vector<128x128xf32>, vector<128x128xf32>, vector<128x128xf32> -> vector<128x128xf32>
      %c0_23 = arith.constant 0 : index
      %c0_24 = arith.constant 0 : index
      %33 = vector.load %arg9[%c0_23, %c0_24] : memref<1x128xf32, #tpu.memory_space<vmem>>, vector<1x128xf32>
      %34 = vector.broadcast %33 : vector<1x128xf32> to vector<128x128xf32>
      %35 = arith.addf %32, %34 : vector<128x128xf32>
      %cst_25 = arith.constant 0.000000e+00 : f32
      %36 = vector.broadcast %cst_25 : f32 to vector<128x128xf32>
      %37 = arith.maximumf %35, %36 : vector<128x128xf32>
      %c0_26 = arith.constant 0 : index
      %c0_27 = arith.constant 0 : index
      %38 = vector.load %arg10[%c0_26, %c0_27] : memref<128x128xf32, #tpu.memory_space<vmem>>, vector<128x128xf32>
      %cst_28 = arith.constant dense<0.000000e+00> : vector<128x128xf32>
      %39 = tpu.matmul %37, %38, %cst_28 {dimension_numbers = #tpu.dot_dimension_numbers<[1], [0], [0], [1], [0, 0, 1, 1], [], []>} : vector<128x128xf32>, vector<128x128xf32>, vector<128x128xf32> -> vector<128x128xf32>
      %c0_29 = arith.constant 0 : index
      %c0_30 = arith.constant 0 : index
      %40 = vector.load %arg11[%c0_29, %c0_30] : memref<1x128xf32, #tpu.memory_space<vmem>>, vector<1x128xf32>
      %41 = vector.broadcast %40 : vector<1x128xf32> to vector<128x128xf32>
      %42 = arith.addf %39, %41 : vector<128x128xf32>
      %c0_31 = arith.constant 0 : index
      %c0_32 = arith.constant 0 : index
      %43 = vector.load %arg12[%c0_31, %c0_32] : memref<128x128xf32, #tpu.memory_space<vmem>>, vector<128x128xf32>
      tpu.vector_store %arg12[%c0_31, %c0_32], %42 {strides = array<i32>} : memref<128x128xf32, #tpu.memory_space<vmem>>, vector<128x128xf32>,
      %c128_i32_33 = arith.constant 128 : i32
      %44 = arith.muli %arg0, %c128_i32_33 : i32
      %45 = tpu.iota {dimensions = array<i32: 0>} : vector<128x128xi32>
      %46 = vector.broadcast %44 : i32 to vector<128x128xi32>
      %47 = arith.addi %46, %45 : vector<128x128xi32>
      %c16_i32 = arith.constant 16 : i32
      %48 = vector.broadcast %c16_i32 : i32 to vector<128x128xi32>
      %49 = arith.cmpi slt, %47, %48 : vector<128x128xi32>
      %cst_34 = arith.constant 0.000000e+00 : f32
      %50 = vector.broadcast %cst_34 : f32 to vector<128x128xf32>
      %51 = arith.select %49, %42, %50 : vector<128x128xi1>, vector<128x128xf32>
      %cst_35 = arith.constant dense<0.000000e+00> : vector<128xf32>
      %52 = vector.multi_reduction <add>, %51, %cst_35 [0] : vector<128x128xf32> to vector<128xf32>
      %53 = vector.shape_cast %52 : vector<128xf32> to vector<1x128xf32>
      %54 = vector.shape_cast %53 : vector<1x128xf32> to vector<1x1x128xf32>
      %c0_36 = arith.constant 0 : index
      %c0_37 = arith.constant 0 : index
      %c0_38 = arith.constant 0 : index
      %55 = vector.load %arg13[%c0_36, %c0_37, %c0_38] : memref<1x1x128xf32, #tpu.memory_space<vmem>>, vector<1x1x128xf32>
      tpu.vector_store %arg13[%c0_36, %c0_37, %c0_38], %54 {strides = array<i32>} : memref<1x1x128xf32, #tpu.memory_space<vmem>>, vector<1x1x128xf32>,
      %56 = arith.mulf %51, %51 : vector<128x128xf32>
      %cst_39 = arith.constant dense<0.000000e+00> : vector<128xf32>
      %57 = vector.multi_reduction <add>, %56, %cst_39 [0] : vector<128x128xf32> to vector<128xf32>
      %58 = vector.shape_cast %57 : vector<128xf32> to vector<1x128xf32>
      %59 = vector.shape_cast %58 : vector<1x128xf32> to vector<1x1x128xf32>
      %c0_40 = arith.constant 0 : index
      %c0_41 = arith.constant 0 : index
      %c0_42 = arith.constant 0 : index
      %60 = vector.load %arg14[%c0_40, %c0_41, %c0_42] : memref<1x1x128xf32, #tpu.memory_space<vmem>>, vector<1x1x128xf32>
      tpu.vector_store %arg14[%c0_40, %c0_41, %c0_42], %59 {strides = array<i32>} : memref<1x1x128xf32, #tpu.memory_space<vmem>>, vector<1x1x128xf32>,
    } else {
    }
    return
  }
  func.func @transform_0(%arg0: i32, %arg1: i32) -> (i32, i32) {
    %c0_i32 = arith.constant 0 : i32
    return %arg0, %arg1 : i32, i32
  }
  func.func @transform_1(%arg0: i32, %arg1: i32) -> (i32, i32) {
    %c0_i32 = arith.constant 0 : i32
    %c0_i32_0 = arith.constant 0 : i32
    %c0_i32_1 = arith.constant 0 : i32
    return %c0_i32, %c0_i32_0 : i32, i32
  }
  func.func @transform_2(%arg0: i32, %arg1: i32) -> (i32, i32) {
    %c0_i32 = arith.constant 0 : i32
    %c0_i32_0 = arith.constant 0 : i32
    %c0_i32_1 = arith.constant 0 : i32
    return %c0_i32, %c0_i32_0 : i32, i32
  }
  func.func @transform_3(%arg0: i32, %arg1: i32) -> (i32, i32) {
    %c0_i32 = arith.constant 0 : i32
    %c0_i32_0 = arith.constant 0 : i32
    %c0_i32_1 = arith.constant 0 : i32
    return %c0_i32, %c0_i32_0 : i32, i32
  }
  func.func @transform_4(%arg0: i32, %arg1: i32) -> (i32, i32) {
    %c0_i32 = arith.constant 0 : i32
    %c0_i32_0 = arith.constant 0 : i32
    %c0_i32_1 = arith.constant 0 : i32
    return %c0_i32, %c0_i32_0 : i32, i32
  }
  func.func @transform_5(%arg0: i32, %arg1: i32) -> (i32, i32) {
    %c0_i32 = arith.constant 0 : i32
    %c0_i32_0 = arith.constant 0 : i32
    %c0_i32_1 = arith.constant 0 : i32
    return %c0_i32, %c0_i32_0 : i32, i32
  }
  func.func @transform_6(%arg0: i32, %arg1: i32) -> (i32, i32) {
    %c0_i32 = arith.constant 0 : i32
    %c0_i32_0 = arith.constant 0 : i32
    %c0_i32_1 = arith.constant 0 : i32
    return %c0_i32, %c0_i32_0 : i32, i32
  }
  func.func @transform_7(%arg0: i32, %arg1: i32) -> (i32, i32) {
    %c0_i32 = arith.constant 0 : i32
    %c0_i32_0 = arith.constant 0 : i32
    %c0_i32_1 = arith.constant 0 : i32
    return %c0_i32, %c0_i32_0 : i32, i32
  }
  func.func @transform_8(%arg0: i32, %arg1: i32) -> (i32, i32) {
    %c0_i32 = arith.constant 0 : i32
    %c0_i32_0 = arith.constant 0 : i32
    %c0_i32_1 = arith.constant 0 : i32
    return %c0_i32, %c0_i32_0 : i32, i32
  }
  func.func @transform_9(%arg0: i32, %arg1: i32) -> (i32, i32) {
    %c0_i32 = arith.constant 0 : i32
    %c0_i32_0 = arith.constant 0 : i32
    %c0_i32_1 = arith.constant 0 : i32
    return %c0_i32, %c0_i32_0 : i32, i32
  }
  func.func @transform_10(%arg0: i32, %arg1: i32) -> (i32, i32) {
    %c0_i32 = arith.constant 0 : i32
    %c0_i32_0 = arith.constant 0 : i32
    return %arg0, %c0_i32 : i32, i32
  }
  func.func @transform_11(%arg0: i32, %arg1: i32) -> (i32, i32, i32) {
    %c0_i32 = arith.constant 0 : i32
    %c0_i32_0 = arith.constant 0 : i32
    %c0_i32_1 = arith.constant 0 : i32
    return %arg0, %c0_i32, %c0_i32_0 : i32, i32, i32
  }
  func.func @transform_12(%arg0: i32, %arg1: i32) -> (i32, i32, i32) {
    %c0_i32 = arith.constant 0 : i32
    %c0_i32_0 = arith.constant 0 : i32
    %c0_i32_1 = arith.constant 0 : i32
    return %arg0, %c0_i32, %c0_i32_0 : i32, i32, i32
  }
}

module attributes {stable_mosaic.version = 11 : i64} {
  func.func @_bn_relu_kernel(%arg0: i32, %arg1: memref<128x128xf32, #tpu.memory_space<vmem>>, %arg2: memref<1x128xf32, #tpu.memory_space<vmem>>, %arg3: memref<1x128xf32, #tpu.memory_space<vmem>>, %arg4: memref<1x128xf32, #tpu.memory_space<vmem>>, %arg5: memref<1x128xf32, #tpu.memory_space<vmem>>, %arg6: memref<128x128xf32, #tpu.memory_space<vmem>>) attributes {dimension_semantics = [#tpu.dimension_semantics<parallel>], iteration_bounds = array<i64: 1>, scalar_prefetch = 0 : i64, scratch_operands = 0 : i64, tpu.core_type = #tpu.core_type<tc>, window_params = [{transform_indices = @transform_0, window_bounds = array<i64: 128, 128>}, {pipeline_mode = #tpu.pipeline_mode<synchronous>, transform_indices = @transform_1, window_bounds = array<i64: 1, 128>}, {pipeline_mode = #tpu.pipeline_mode<synchronous>, transform_indices = @transform_2, window_bounds = array<i64: 1, 128>}, {pipeline_mode = #tpu.pipeline_mode<synchronous>, transform_indices = @transform_3, window_bounds = array<i64: 1, 128>}, {pipeline_mode = #tpu.pipeline_mode<synchronous>, transform_indices = @transform_4, window_bounds = array<i64: 1, 128>}, {transform_indices = @transform_5, window_bounds = array<i64: 128, 128>}]} {
    %c0 = arith.constant 0 : index
    %c0_0 = arith.constant 0 : index
    %0 = vector.load %arg1[%c0, %c0_0] : memref<128x128xf32, #tpu.memory_space<vmem>>, vector<128x128xf32>
    %c0_1 = arith.constant 0 : index
    %c0_2 = arith.constant 0 : index
    %1 = vector.load %arg2[%c0_1, %c0_2] : memref<1x128xf32, #tpu.memory_space<vmem>>, vector<1x128xf32>
    %2 = vector.broadcast %1 : vector<1x128xf32> to vector<128x128xf32>
    %3 = arith.subf %0, %2 : vector<128x128xf32>
    %c0_3 = arith.constant 0 : index
    %c0_4 = arith.constant 0 : index
    %4 = vector.load %arg3[%c0_3, %c0_4] : memref<1x128xf32, #tpu.memory_space<vmem>>, vector<1x128xf32>
    %5 = vector.broadcast %4 : vector<1x128xf32> to vector<128x128xf32>
    %6 = arith.mulf %3, %5 : vector<128x128xf32>
    %c0_5 = arith.constant 0 : index
    %c0_6 = arith.constant 0 : index
    %7 = vector.load %arg4[%c0_5, %c0_6] : memref<1x128xf32, #tpu.memory_space<vmem>>, vector<1x128xf32>
    %8 = vector.broadcast %7 : vector<1x128xf32> to vector<128x128xf32>
    %9 = arith.mulf %6, %8 : vector<128x128xf32>
    %c0_7 = arith.constant 0 : index
    %c0_8 = arith.constant 0 : index
    %10 = vector.load %arg5[%c0_7, %c0_8] : memref<1x128xf32, #tpu.memory_space<vmem>>, vector<1x128xf32>
    %11 = vector.broadcast %10 : vector<1x128xf32> to vector<128x128xf32>
    %12 = arith.addf %9, %11 : vector<128x128xf32>
    %cst = arith.constant 0.000000e+00 : f32
    %13 = vector.broadcast %cst : f32 to vector<128x128xf32>
    %14 = arith.maximumf %12, %13 : vector<128x128xf32>
    %c0_9 = arith.constant 0 : index
    %c0_10 = arith.constant 0 : index
    %15 = vector.load %arg6[%c0_9, %c0_10] : memref<128x128xf32, #tpu.memory_space<vmem>>, vector<128x128xf32>
    tpu.vector_store %arg6[%c0_9, %c0_10], %14 {strides = array<i32>} : memref<128x128xf32, #tpu.memory_space<vmem>>, vector<128x128xf32>,
    return
  }
  func.func @transform_0(%arg0: i32) -> (i32, i32) {
    %c0_i32 = arith.constant 0 : i32
    %c0_i32_0 = arith.constant 0 : i32
    return %arg0, %c0_i32 : i32, i32
  }
  func.func @transform_1(%arg0: i32) -> (i32, i32) {
    %c0_i32 = arith.constant 0 : i32
    %c0_i32_0 = arith.constant 0 : i32
    %c0_i32_1 = arith.constant 0 : i32
    return %c0_i32, %c0_i32_0 : i32, i32
  }
  func.func @transform_2(%arg0: i32) -> (i32, i32) {
    %c0_i32 = arith.constant 0 : i32
    %c0_i32_0 = arith.constant 0 : i32
    %c0_i32_1 = arith.constant 0 : i32
    return %c0_i32, %c0_i32_0 : i32, i32
  }
  func.func @transform_3(%arg0: i32) -> (i32, i32) {
    %c0_i32 = arith.constant 0 : i32
    %c0_i32_0 = arith.constant 0 : i32
    %c0_i32_1 = arith.constant 0 : i32
    return %c0_i32, %c0_i32_0 : i32, i32
  }
  func.func @transform_4(%arg0: i32) -> (i32, i32) {
    %c0_i32 = arith.constant 0 : i32
    %c0_i32_0 = arith.constant 0 : i32
    %c0_i32_1 = arith.constant 0 : i32
    return %c0_i32, %c0_i32_0 : i32, i32
  }
  func.func @transform_5(%arg0: i32) -> (i32, i32) {
    %c0_i32 = arith.constant 0 : i32
    %c0_i32_0 = arith.constant 0 : i32
    return %arg0, %c0_i32 : i32, i32
  }
}

</mosaic_0001>

<llo_original>
// kernel: gin_forward.4
$region0: #{gin_forward.4}
  #allocation0 [shape = 'u32[]', space=smem, size = 0x4, offset = 0x4, fixed_abs, tag = 'smem constant byte address 0x4 - core index']
  #allocation1 [shape = 'u32[72,128]{1,0:T(1,128)}', space=vmem, size = 0x9000, scoped, tag = 'internal scratch']
  #allocation2 [shape = 'f32[128,128]{1,0:T(8,128)}', space=vmem, size = 0x10000, scoped, tag = 'scratch operand']
  %s0 = inlined_call_operand.vmem [shape: bf16[128,128], index: 0, kind: input, shape index: {}]
  %s1 = inlined_call_operand.vmem [shape: f32[128,128], index: 1, kind: input, shape index: {}]
  %s2 = inlined_call_operand.vmem [shape: f32[1,128], index: 2, kind: input, shape index: {}, may-alias: {2,3,4,5}]
  %s3 = inlined_call_operand.vmem [shape: f32[1,128], index: 3, kind: input, shape index: {}, may-alias: {2,3,4,5}]
  %s4 = inlined_call_operand.vmem [shape: f32[1,128], index: 4, kind: input, shape index: {}, may-alias: {2,3,4,5}]
  %s5 = inlined_call_operand.vmem [shape: f32[1,128], index: 5, kind: input, shape index: {}, may-alias: {2,3,4,5}]
  %s6 = inlined_call_operand.vmem [shape: f32[128,128], index: 6, kind: input, shape index: {}]
  %s7 = inlined_call_operand.vmem [shape: f32[1,128], index: 7, kind: input, shape index: {}]
  %s8 = inlined_call_operand.vmem [shape: f32[128,128], index: 8, kind: input, shape index: {}]
  %s9 = inlined_call_operand.vmem [shape: f32[1,128], index: 9, kind: input, shape index: {}]
  %s10 = inlined_call_operand.vmem [shape: f32[128,128], index: 10, kind: output, shape index: {0}]
  %s11 = inlined_call_operand.vmem [shape: f32[1,1,128], index: 11, kind: output, shape index: {1}]
  %s12 = inlined_call_operand.vmem [shape: f32[1,1,128], index: 12, kind: output, shape index: {2}]
  %13 = xla_tuple %s10, %s11, %s12
  %s14 = sld [smem:[#allocation0]]
  $region74: #{gin_forward.4} parent=0
    _
  %s16 = ssub.s32 1, %s14
  %s17 = scalar_select 0, %s16, %s14
  // Predicated region
  $region2: #{gin_forward.4} parent=0 // pred_check
    _
  $region3: #{gin_forward.4} parent=0 // pred_check_branch
    %19 = sbr.rel (0) target = $region5
  $region4: #{gin_forward.4} parent=0 // pred_region
    _
  $region5: #{gin_forward.4} parent=0 // pred_fallthru
    _
  // Predicated region
  $region6: #{gin_forward.4} parent=0 // pred_check
    _
  $region7: #{gin_forward.4} parent=0 // pred_check_branch
    %21 = sbr.rel (0) target = $region9
  $region8: #{gin_forward.4} parent=0 // pred_region
    _
  $region9: #{gin_forward.4} parent=0 // pred_fallthru
    _
  // Predicated region
  $region10: #{gin_forward.4} parent=0 // pred_check
    _
  $region11: #{gin_forward.4} parent=0 // pred_check_branch
    %23 = sbr.rel (0) target = $region13
  $region12: #{gin_forward.4} parent=0 // pred_region
    _
  $region13: #{gin_forward.4} parent=0 // pred_fallthru
    _
  // Predicated region
  $region14: #{gin_forward.4} parent=0 // pred_check
    _
  $region15: #{gin_forward.4} parent=0 // pred_check_branch
    %25 = sbr.rel (0) target = $region17
  $region16: #{gin_forward.4} parent=0 // pred_region
    _
  $region17: #{gin_forward.4} parent=0 // pred_fallthru
    _
  // Predicated region
  $region18: #{gin_forward.4} parent=0 // pred_check
    _
  $region19: #{gin_forward.4} parent=0 // pred_check_branch
    %27 = sbr.rel (0) target = $region21
  $region20: #{gin_forward.4} parent=0 // pred_region
    _
  $region21: #{gin_forward.4} parent=0 // pred_fallthru
    _
  // Predicated region
  $region22: #{gin_forward.4} parent=0 // pred_check
    _
  $region23: #{gin_forward.4} parent=0 // pred_check_branch
    %29 = sbr.rel (0) target = $region25
  $region24: #{gin_forward.4} parent=0 // pred_region
    _
  $region25: #{gin_forward.4} parent=0 // pred_fallthru
    _
  // Predicated region
  $region26: #{gin_forward.4} parent=0 // pred_check
    _
  $region27: #{gin_forward.4} parent=0 // pred_check_branch
    %31 = sbr.rel (0) target = $region29
  $region28: #{gin_forward.4} parent=0 // pred_region
    _
  $region29: #{gin_forward.4} parent=0 // pred_fallthru
    _
  // Predicated region
  $region30: #{gin_forward.4} parent=0 // pred_check
    _
  $region31: #{gin_forward.4} parent=0 // pred_check_branch
    %33 = sbr.rel (0) target = $region33
  $region32: #{gin_forward.4} parent=0 // pred_region
    _
  $region33: #{gin_forward.4} parent=0 // pred_fallthru
    _
  // Predicated region
  $region34: #{gin_forward.4} parent=0 // pred_check
    _
  $region35: #{gin_forward.4} parent=0 // pred_check_branch
    %35 = sbr.rel (0) target = $region37
  $region36: #{gin_forward.4} parent=0 // pred_region
    _
  $region37: #{gin_forward.4} parent=0 // pred_fallthru
    _
  // Predicated region
  $region38: #{gin_forward.4} parent=0 // pred_check
    _
  $region39: #{gin_forward.4} parent=0 // pred_check_branch
    %37 = sbr.rel (0) target = $region41
  $region40: #{gin_forward.4} parent=0 // pred_region
    _
  $region41: #{gin_forward.4} parent=0 // pred_fallthru
    _
  %p38 = scmp.eq.s32.totalorder 0, 0
  // Predicated region
  $region42: #{gin_forward.4} parent=0 // pred_check
    %p39 = pneg %p38
  $region43: #{gin_forward.4} parent=0 // pred_check_branch
    %41 = sbr.rel (%p39) target = $region45
  $region44: #{gin_forward.4} parent=0 // pred_region
    %42 = vst [vmem:[#allocation2] sm:$0xff] 0.0
    %43 = vst [vmem:[#allocation2 + $0x8] sm:$0xff] 0.0
    %44 = vst [vmem:[#allocation2 + $0x10] sm:$0xff] 0.0
    %45 = vst [vmem:[#allocation2 + $0x18] sm:$0xff] 0.0
    %46 = vst [vmem:[#allocation2 + $0x20] sm:$0xff] 0.0
    %47 = vst [vmem:[#allocation2 + $0x28] sm:$0xff] 0.0
    %48 = vst [vmem:[#allocation2 + $0x30] sm:$0xff] 0.0
    %49 = vst [vmem:[#allocation2 + $0x38] sm:$0xff] 0.0
    %50 = vst [vmem:[#allocation2 + $0x40] sm:$0xff] 0.0
    %51 = vst [vmem:[#allocation2 + $0x48] sm:$0xff] 0.0
    %52 = vst [vmem:[#allocation2 + $0x50] sm:$0xff] 0.0
    %53 = vst [vmem:[#allocation2 + $0x58] sm:$0xff] 0.0
    %54 = vst [vmem:[#allocation2 + $0x60] sm:$0xff] 0.0
    %55 = vst [vmem:[#allocation2 + $0x68] sm:$0xff] 0.0
    %56 = vst [vmem:[#allocation2 + $0x70] sm:$0xff] 0.0
    %57 = vst [vmem:[#allocation2 + $0x78] sm:$0xff] 0.0
  $region45: #{gin_forward.4} parent=0 // pred_fallthru
    _
  %s58 = smul.u32 0, 128
  %s59 = scalar_lea.vmem %s1, %s58
  %v60 = vld [vmem:[%s59] sm:$0xff]
  %v61 = vld [vmem:[%s59 + $0x8] sm:$0xff]
  %v62 = vld [vmem:[%s59 + $0x10] sm:$0xff]
  %v63 = vld [vmem:[%s59 + $0x18] sm:$0xff]
  %v64 = vld [vmem:[%s59 + $0x20] sm:$0xff]
  %v65 = vld [vmem:[%s59 + $0x28] sm:$0xff]
  %v66 = vld [vmem:[%s59 + $0x30] sm:$0xff]
  %v67 = vld [vmem:[%s59 + $0x38] sm:$0xff]
  %v68 = vld [vmem:[%s59 + $0x40] sm:$0xff]
  %v69 = vld [vmem:[%s59 + $0x48] sm:$0xff]
  %v70 = vld [vmem:[%s59 + $0x50] sm:$0xff]
  %v71 = vld [vmem:[%s59 + $0x58] sm:$0xff]
  %v72 = vld [vmem:[%s59 + $0x60] sm:$0xff]
  %v73 = vld [vmem:[%s59 + $0x68] sm:$0xff]
  %v74 = vld [vmem:[%s59 + $0x70] sm:$0xff]
  %v75 = vld [vmem:[%s59 + $0x78] sm:$0xff]
  %v76 = vld [vmem:[#allocation2] sm:$0xff]
  %v77 = vld [vmem:[#allocation2 + $0x8] sm:$0xff]
  %v78 = vld [vmem:[#allocation2 + $0x10] sm:$0xff]
  %v79 = vld [vmem:[#allocation2 + $0x18] sm:$0xff]
  %v80 = vld [vmem:[#allocation2 + $0x20] sm:$0xff]
  %v81 = vld [vmem:[#allocation2 + $0x28] sm:$0xff]
  %v82 = vld [vmem:[#allocation2 + $0x30] sm:$0xff]
  %v83 = vld [vmem:[#allocation2 + $0x38] sm:$0xff]
  %v84 = vld [vmem:[#allocation2 + $0x40] sm:$0xff]
  %v85 = vld [vmem:[#allocation2 + $0x48] sm:$0xff]
  %v86 = vld [vmem:[#allocation2 + $0x50] sm:$0xff]
  %v87 = vld [vmem:[#allocation2 + $0x58] sm:$0xff]
  %v88 = vld [vmem:[#allocation2 + $0x60] sm:$0xff]
  %v89 = vld [vmem:[#allocation2 + $0x68] sm:$0xff]
  %v90 = vld [vmem:[#allocation2 + $0x70] sm:$0xff]
  %v91 = vld [vmem:[#allocation2 + $0x78] sm:$0xff]
  %v92 = vld [vmem:[%s0] sm:$0xf]
  %v93 = vld [vmem:[%s0 + $0x4] sm:$0xf]
  %v94 = vld [vmem:[%s0 + $0x8] sm:$0xf]
  %v95 = vld [vmem:[%s0 + $0xc] sm:$0xf]
  %v96 = vld [vmem:[%s0 + $0x10] sm:$0xf]
  %v97 = vld [vmem:[%s0 + $0x14] sm:$0xf]
  %v98 = vld [vmem:[%s0 + $0x18] sm:$0xf]
  %v99 = vld [vmem:[%s0 + $0x1c] sm:$0xf]
  %v100 = vld [vmem:[%s0 + $0x20] sm:$0xf]
  %v101 = vld [vmem:[%s0 + $0x24] sm:$0xf]
  %v102 = vld [vmem:[%s0 + $0x28] sm:$0xf]
  %v103 = vld [vmem:[%s0 + $0x2c] sm:$0xf]
  %v104 = vld [vmem:[%s0 + $0x30] sm:$0xf]
  %v105 = vld [vmem:[%s0 + $0x34] sm:$0xf]
  %v106 = vld [vmem:[%s0 + $0x38] sm:$0xf]
  %v107 = vld [vmem:[%s0 + $0x3c] sm:$0xf]
  %v108 = vunpack.c.l.bf16 %v92
  %v109 = vunpack.c.l.bf16 %v93
  %v110 = vunpack.c.l.bf16 %v94
  %v111 = vunpack.c.l.bf16 %v95
  %v112 = vunpack.c.l.bf16 %v96
  %v113 = vunpack.c.l.bf16 %v97
  %v114 = vunpack.c.l.bf16 %v98
  %v115 = vunpack.c.l.bf16 %v99
  %v116 = vunpack.c.l.bf16 %v100
  %v117 = vunpack.c.l.bf16 %v101
  %v118 = vunpack.c.l.bf16 %v102
  %v119 = vunpack.c.l.bf16 %v103
  %v120 = vunpack.c.l.bf16 %v104
  %v121 = vunpack.c.l.bf16 %v105
  %v122 = vunpack.c.l.bf16 %v106
  %v123 = vunpack.c.l.bf16 %v107
  %124 = vmatpush.msra.mxu0 %v75
  %125 = vmatpush.msra.mxu0 %v74
  %126 = vmatpush.msra.mxu0 %v73
  %127 = vmatpush.msra.mxu0 %v72
  %128 = vmatpush.msra.mxu0 %v71
  %129 = vmatpush.msra.mxu0 %v70
  %130 = vmatpush.msra.mxu0 %v69
  %131 = vmatpush.msra.mxu0 %v68
  %132 = vmatpush.msra.mxu0 %v67
  %133 = vmatpush.msra.mxu0 %v66
  %134 = vmatpush.msra.mxu0 %v65
  %135 = vmatpush.msra.mxu0 %v64
  %136 = vmatpush.msra.mxu0 %v63
  %137 = vmatpush.msra.mxu0 %v62
  %138 = vmatpush.msra.mxu0 %v61
  %139 = vmatpush.msra.mxu0 %v60
  %140 = vmatmul.f32.gmra.mxu0 %v108
  %v141 = vpop.f32.mrf.mxu0
  %v142 = vadd.f32 0.0, %v141
  %143 = vmatmul.f32.gmra.mxu0 %v109
  %v144 = vpop.f32.mrf.mxu0
  %v145 = vadd.f32 0.0, %v144
  %146 = vmatmul.f32.gmra.mxu0 %v110
  %v147 = vpop.f32.mrf.mxu0
  %v148 = vadd.f32 0.0, %v147
  %149 = vmatmul.f32.gmra.mxu0 %v111
  %v150 = vpop.f32.mrf.mxu0
  %v151 = vadd.f32 0.0, %v150
  %152 = vmatmul.f32.gmra.mxu0 %v112
  %v153 = vpop.f32.mrf.mxu0
  %v154 = vadd.f32 0.0, %v153
  %155 = vmatmul.f32.gmra.mxu0 %v113
  %v156 = vpop.f32.mrf.mxu0
  %v157 = vadd.f32 0.0, %v156
  %158 = vmatmul.f32.gmra.mxu0 %v114
  %v159 = vpop.f32.mrf.mxu0
  %v160 = vadd.f32 0.0, %v159
  %161 = vmatmul.f32.gmra.mxu0 %v115
  %v162 = vpop.f32.mrf.mxu0
  %v163 = vadd.f32 0.0, %v162
  %164 = vmatmul.f32.gmra.mxu0 %v116
  %v165 = vpop.f32.mrf.mxu0
  %v166 = vadd.f32 0.0, %v165
  %167 = vmatmul.f32.gmra.mxu0 %v117
  %v168 = vpop.f32.mrf.mxu0
  %v169 = vadd.f32 0.0, %v168
  %170 = vmatmul.f32.gmra.mxu0 %v118
  %v171 = vpop.f32.mrf.mxu0
  %v172 = vadd.f32 0.0, %v171
  %173 = vmatmul.f32.gmra.mxu0 %v119
  %v174 = vpop.f32.mrf.mxu0
  %v175 = vadd.f32 0.0, %v174
  %176 = vmatmul.f32.gmra.mxu0 %v120
  %v177 = vpop.f32.mrf.mxu0
  %v178 = vadd.f32 0.0, %v177
  %179 = vmatmul.f32.gmra.mxu0 %v121
  %v180 = vpop.f32.mrf.mxu0
  %v181 = vadd.f32 0.0, %v180
  %182 = vmatmul.f32.gmra.mxu0 %v122
  %v183 = vpop.f32.mrf.mxu0
  %v184 = vadd.f32 0.0, %v183
  %185 = vmatmul.f32.gmra.mxu0 %v123
  %v186 = vpop.f32.mrf.mxu0
  %v187 = vadd.f32 0.0, %v186
  %188 = vdwg.mxu0
  %v189 = vadd.f32 %v76, %v142
  %v190 = vadd.f32 %v77, %v145
  %v191 = vadd.f32 %v78, %v148
  %v192 = vadd.f32 %v79, %v151
  %v193 = vadd.f32 %v80, %v154
  %v194 = vadd.f32 %v81, %v157
  %v195 = vadd.f32 %v82, %v160
  %v196 = vadd.f32 %v83, %v163
  %v197 = vadd.f32 %v84, %v166
  %v198 = vadd.f32 %v85, %v169
  %v199 = vadd.f32 %v86, %v172
  %v200 = vadd.f32 %v87, %v175
  %v201 = vadd.f32 %v88, %v178
  %v202 = vadd.f32 %v89, %v181
  %v203 = vadd.f32 %v90, %v184
  %v204 = vadd.f32 %v91, %v187
  %205 = vst [vmem:[#allocation2] sm:$0xff] %v189
  %206 = vst [vmem:[#allocation2 + $0x8] sm:$0xff] %v190
  %207 = vst [vmem:[#allocation2 + $0x10] sm:$0xff] %v191
  %208 = vst [vmem:[#allocation2 + $0x18] sm:$0xff] %v192
  %209 = vst [vmem:[#allocation2 + $0x20] sm:$0xff] %v193
  %210 = vst [vmem:[#allocation2 + $0x28] sm:$0xff] %v194
  %211 = vst [vmem:[#allocation2 + $0x30] sm:$0xff] %v195
  %212 = vst [vmem:[#allocation2 + $0x38] sm:$0xff] %v196
  %213 = vst [vmem:[#allocation2 + $0x40] sm:$0xff] %v197
  %214 = vst [vmem:[#allocation2 + $0x48] sm:$0xff] %v198
  %215 = vst [vmem:[#allocation2 + $0x50] sm:$0xff] %v199
  %216 = vst [vmem:[#allocation2 + $0x58] sm:$0xff] %v200
  %217 = vst [vmem:[#allocation2 + $0x60] sm:$0xff] %v201
  %218 = vst [vmem:[#allocation2 + $0x68] sm:$0xff] %v202
  %219 = vst [vmem:[#allocation2 + $0x70] sm:$0xff] %v203
  %220 = vst [vmem:[#allocation2 + $0x78] sm:$0xff] %v204
  // Predicated region
  $region46: #{gin_forward.4} parent=0 // pred_check
    %p221 = pneg %p38
  $region47: #{gin_forward.4} parent=0 // pred_check_branch
    %223 = sbr.rel (%p221) target = $region49
  $region48: #{gin_forward.4} parent=0 // pred_region
    %v224 = vld [vmem:[#allocation2] sm:$0xff]
    %v225 = vld [vmem:[#allocation2 + $0x8] sm:$0xff]
    %v226 = vld [vmem:[#allocation2 + $0x10] sm:$0xff]
    %v227 = vld [vmem:[#allocation2 + $0x18] sm:$0xff]
    %v228 = vld [vmem:[#allocation2 + $0x20] sm:$0xff]
    %v229 = vld [vmem:[#allocation2 + $0x28] sm:$0xff]
    %v230 = vld [vmem:[#allocation2 + $0x30] sm:$0xff]
    %v231 = vld [vmem:[#allocation2 + $0x38] sm:$0xff]
    %v232 = vld [vmem:[#allocation2 + $0x40] sm:$0xff]
    %v233 = vld [vmem:[#allocation2 + $0x48] sm:$0xff]
    %v234 = vld [vmem:[#allocation2 + $0x50] sm:$0xff]
    %v235 = vld [vmem:[#allocation2 + $0x58] sm:$0xff]
    %v236 = vld [vmem:[#allocation2 + $0x60] sm:$0xff]
    %v237 = vld [vmem:[#allocation2 + $0x68] sm:$0xff]
    %v238 = vld [vmem:[#allocation2 + $0x70] sm:$0xff]
    %v239 = vld [vmem:[#allocation2 + $0x78] sm:$0xff]
    %v240 = vld [vmem:[%s6] sm:$0xff]
    %v241 = vld [vmem:[%s6 + $0x8] sm:$0xff]
    %v242 = vld [vmem:[%s6 + $0x10] sm:$0xff]
    %v243 = vld [vmem:[%s6 + $0x18] sm:$0xff]
    %v244 = vld [vmem:[%s6 + $0x20] sm:$0xff]
    %v245 = vld [vmem:[%s6 + $0x28] sm:$0xff]
    %v246 = vld [vmem:[%s6 + $0x30] sm:$0xff]
    %v247 = vld [vmem:[%s6 + $0x38] sm:$0xff]
    %v248 = vld [vmem:[%s6 + $0x40] sm:$0xff]
    %v249 = vld [vmem:[%s6 + $0x48] sm:$0xff]
    %v250 = vld [vmem:[%s6 + $0x50] sm:$0xff]
    %v251 = vld [vmem:[%s6 + $0x58] sm:$0xff]
    %v252 = vld [vmem:[%s6 + $0x60] sm:$0xff]
    %v253 = vld [vmem:[%s6 + $0x68] sm:$0xff]
    %v254 = vld [vmem:[%s6 + $0x70] sm:$0xff]
    %v255 = vld [vmem:[%s6 + $0x78] sm:$0xff]
    %v256 = vld [vmem:[%s7] sm:$0x1]
    %v258 = vperm.slane %v256, 0
    %260 = vmatpush.msra.mxu0 %v255
    %261 = vmatpush.msra.mxu0 %v254
    %262 = vmatpush.msra.mxu0 %v253
    %263 = vmatpush.msra.mxu0 %v252
    %264 = vmatpush.msra.mxu0 %v251
    %265 = vmatpush.msra.mxu0 %v250
    %266 = vmatpush.msra.mxu0 %v249
    %267 = vmatpush.msra.mxu0 %v248
    %268 = vmatpush.msra.mxu0 %v247
    %269 = vmatpush.msra.mxu0 %v246
    %270 = vmatpush.msra.mxu0 %v245
    %271 = vmatpush.msra.mxu0 %v244
    %272 = vmatpush.msra.mxu0 %v243
    %273 = vmatpush.msra.mxu0 %v242
    %274 = vmatpush.msra.mxu0 %v241
    %275 = vmatpush.msra.mxu0 %v240
    %276 = vmatmul.f32.gmra.mxu0 %v224
    %v277 = vpop.f32.mrf.mxu0
    %v278 = vadd.f32 %v258, %v277
    %279 = vmatmul.f32.gmra.mxu0 %v225
    %v280 = vpop.f32.mrf.mxu0
    %v281 = vadd.f32 %v258, %v280
    %282 = vmatmul.f32.gmra.mxu0 %v226
    %v283 = vpop.f32.mrf.mxu0
    %v284 = vadd.f32 %v258, %v283
    %285 = vmatmul.f32.gmra.mxu0 %v227
    %v286 = vpop.f32.mrf.mxu0
    %v287 = vadd.f32 %v258, %v286
    %288 = vmatmul.f32.gmra.mxu0 %v228
    %v289 = vpop.f32.mrf.mxu0
    %v290 = vadd.f32 %v258, %v289
    %291 = vmatmul.f32.gmra.mxu0 %v229
    %v292 = vpop.f32.mrf.mxu0
    %v293 = vadd.f32 %v258, %v292
    %294 = vmatmul.f32.gmra.mxu0 %v230
    %v295 = vpop.f32.mrf.mxu0
    %v296 = vadd.f32 %v258, %v295
    %297 = vmatmul.f32.gmra.mxu0 %v231
    %v298 = vpop.f32.mrf.mxu0
    %v299 = vadd.f32 %v258, %v298
    %300 = vmatmul.f32.gmra.mxu0 %v232
    %v301 = vpop.f32.mrf.mxu0
    %v302 = vadd.f32 %v258, %v301
    %303 = vmatmul.f32.gmra.mxu0 %v233
    %v304 = vpop.f32.mrf.mxu0
    %v305 = vadd.f32 %v258, %v304
    %306 = vmatmul.f32.gmra.mxu0 %v234
    %v307 = vpop.f32.mrf.mxu0
    %v308 = vadd.f32 %v258, %v307
    %309 = vmatmul.f32.gmra.mxu0 %v235
    %v310 = vpop.f32.mrf.mxu0
    %v311 = vadd.f32 %v258, %v310
    %312 = vmatmul.f32.gmra.mxu0 %v236
    %v313 = vpop.f32.mrf.mxu0
    %v314 = vadd.f32 %v258, %v313
    %315 = vmatmul.f32.gmra.mxu0 %v237
    %v316 = vpop.f32.mrf.mxu0
    %v317 = vadd.f32 %v258, %v316
    %318 = vmatmul.f32.gmra.mxu0 %v238
    %v319 = vpop.f32.mrf.mxu0
    %v320 = vadd.f32 %v258, %v319
    %321 = vmatmul.f32.gmra.mxu0 %v239
    %v322 = vpop.f32.mrf.mxu0
    %v323 = vadd.f32 %v258, %v322
    %324 = vdwg.mxu0
    %v325 = vmax.f32 %v278, 0.0
    %v326 = vmax.f32 %v281, 0.0
    %v327 = vmax.f32 %v284, 0.0
    %v328 = vmax.f32 %v287, 0.0
    %v329 = vmax.f32 %v290, 0.0
    %v330 = vmax.f32 %v293, 0.0
    %v331 = vmax.f32 %v296, 0.0
    %v332 = vmax.f32 %v299, 0.0
    %v333 = vmax.f32 %v302, 0.0
    %v334 = vmax.f32 %v305, 0.0
    %v335 = vmax.f32 %v308, 0.0
    %v336 = vmax.f32 %v311, 0.0
    %v337 = vmax.f32 %v314, 0.0
    %v338 = vmax.f32 %v317, 0.0
    %v339 = vmax.f32 %v320, 0.0
    %v340 = vmax.f32 %v323, 0.0
    %v341 = vld [vmem:[%s8] sm:$0xff]
    %v342 = vld [vmem:[%s8 + $0x8] sm:$0xff]
    %v343 = vld [vmem:[%s8 + $0x10] sm:$0xff]
    %v344 = vld [vmem:[%s8 + $0x18] sm:$0xff]
    %v345 = vld [vmem:[%s8 + $0x20] sm:$0xff]
    %v346 = vld [vmem:[%s8 + $0x28] sm:$0xff]
    %v347 = vld [vmem:[%s8 + $0x30] sm:$0xff]
    %v348 = vld [vmem:[%s8 + $0x38] sm:$0xff]
    %v349 = vld [vmem:[%s8 + $0x40] sm:$0xff]
    %v350 = vld [vmem:[%s8 + $0x48] sm:$0xff]
    %v351 = vld [vmem:[%s8 + $0x50] sm:$0xff]
    %v352 = vld [vmem:[%s8 + $0x58] sm:$0xff]
    %v353 = vld [vmem:[%s8 + $0x60] sm:$0xff]
    %v354 = vld [vmem:[%s8 + $0x68] sm:$0xff]
    %v355 = vld [vmem:[%s8 + $0x70] sm:$0xff]
    %v356 = vld [vmem:[%s8 + $0x78] sm:$0xff]
    %v357 = vld [vmem:[%s9] sm:$0x1]
    %v359 = vperm.slane %v357, 0
    %361 = vmatpush.msra.mxu0 %v356
    %362 = vmatpush.msra.mxu0 %v355
    %363 = vmatpush.msra.mxu0 %v354
    %364 = vmatpush.msra.mxu0 %v353
    %365 = vmatpush.msra.mxu0 %v352
    %366 = vmatpush.msra.mxu0 %v351
    %367 = vmatpush.msra.mxu0 %v350
    %368 = vmatpush.msra.mxu0 %v349
    %369 = vmatpush.msra.mxu0 %v348
    %370 = vmatpush.msra.mxu0 %v347
    %371 = vmatpush.msra.mxu0 %v346
    %372 = vmatpush.msra.mxu0 %v345
    %373 = vmatpush.msra.mxu0 %v344
    %374 = vmatpush.msra.mxu0 %v343
    %375 = vmatpush.msra.mxu0 %v342
    %376 = vmatpush.msra.mxu0 %v341
    %377 = vmatmul.f32.gmra.mxu0 %v325
    %v378 = vpop.f32.mrf.mxu0
    %v379 = vadd.f32 %v359, %v378
    %380 = vmatmul.f32.gmra.mxu0 %v326
    %v381 = vpop.f32.mrf.mxu0
    %v382 = vadd.f32 %v359, %v381
    %383 = vmatmul.f32.gmra.mxu0 %v327
    %v384 = vpop.f32.mrf.mxu0
    %v385 = vadd.f32 %v359, %v384
    %386 = vmatmul.f32.gmra.mxu0 %v328
    %v387 = vpop.f32.mrf.mxu0
    %v388 = vadd.f32 %v359, %v387
    %389 = vmatmul.f32.gmra.mxu0 %v329
    %v390 = vpop.f32.mrf.mxu0
    %v391 = vadd.f32 %v359, %v390
    %392 = vmatmul.f32.gmra.mxu0 %v330
    %v393 = vpop.f32.mrf.mxu0
    %v394 = vadd.f32 %v359, %v393
    %395 = vmatmul.f32.gmra.mxu0 %v331
    %v396 = vpop.f32.mrf.mxu0
    %v397 = vadd.f32 %v359, %v396
    %398 = vmatmul.f32.gmra.mxu0 %v332
    %v399 = vpop.f32.mrf.mxu0
    %v400 = vadd.f32 %v359, %v399
    %401 = vmatmul.f32.gmra.mxu0 %v333
    %v402 = vpop.f32.mrf.mxu0
    %v403 = vadd.f32 %v359, %v402
    %404 = vmatmul.f32.gmra.mxu0 %v334
    %v405 = vpop.f32.mrf.mxu0
    %v406 = vadd.f32 %v359, %v405
    %407 = vmatmul.f32.gmra.mxu0 %v335
    %v408 = vpop.f32.mrf.mxu0
    %v409 = vadd.f32 %v359, %v408
    %410 = vmatmul.f32.gmra.mxu0 %v336
    %v411 = vpop.f32.mrf.mxu0
    %v412 = vadd.f32 %v359, %v411
    %413 = vmatmul.f32.gmra.mxu0 %v337
    %v414 = vpop.f32.mrf.mxu0
    %v415 = vadd.f32 %v359, %v414
    %416 = vmatmul.f32.gmra.mxu0 %v338
    %v417 = vpop.f32.mrf.mxu0
    %v418 = vadd.f32 %v359, %v417
    %419 = vmatmul.f32.gmra.mxu0 %v339
    %v420 = vpop.f32.mrf.mxu0
    %v421 = vadd.f32 %v359, %v420
    %422 = vmatmul.f32.gmra.mxu0 %v340
    %v423 = vpop.f32.mrf.mxu0
    %v424 = vadd.f32 %v359, %v423
    %425 = vdwg.mxu0
    %426 = vst [vmem:[%s10] sm:$0xff] %v379
    %427 = vst [vmem:[%s10 + $0x8] sm:$0xff] %v382
    %428 = vst [vmem:[%s10 + $0x10] sm:$0xff] %v385
    %429 = vst [vmem:[%s10 + $0x18] sm:$0xff] %v388
    %430 = vst [vmem:[%s10 + $0x20] sm:$0xff] %v391
    %431 = vst [vmem:[%s10 + $0x28] sm:$0xff] %v394
    %432 = vst [vmem:[%s10 + $0x30] sm:$0xff] %v397
    %433 = vst [vmem:[%s10 + $0x38] sm:$0xff] %v400
    %434 = vst [vmem:[%s10 + $0x40] sm:$0xff] %v403
    %435 = vst [vmem:[%s10 + $0x48] sm:$0xff] %v406
    %436 = vst [vmem:[%s10 + $0x50] sm:$0xff] %v409
    %437 = vst [vmem:[%s10 + $0x58] sm:$0xff] %v412
    %438 = vst [vmem:[%s10 + $0x60] sm:$0xff] %v415
    %439 = vst [vmem:[%s10 + $0x68] sm:$0xff] %v418
    %440 = vst [vmem:[%s10 + $0x70] sm:$0xff] %v421
    %441 = vst [vmem:[%s10 + $0x78] sm:$0xff] %v424
    %s442 = smul.u32 0, 128
    %v443 = vlaneseq
    %v444 = vshrl.u32 %v443, 7
    %v445 = vadd.s32 %v444, 8
    %v446 = vadd.s32 %v444, 16
    %v447 = vadd.s32 %v444, 24
    %v448 = vadd.s32 %v444, 32
    %v449 = vadd.s32 %v444, 40
    %v450 = vadd.s32 %v444, 48
    %v451 = vadd.s32 %v444, 56
    %v452 = vadd.s32 %v444, 64
    %v453 = vadd.s32 %v444, 72
    %v454 = vadd.s32 %v444, 80
    %v455 = vadd.s32 %v444, 88
    %v456 = vadd.s32 %v444, 96
    %v457 = vadd.s32 %v444, 104
    %v458 = vadd.s32 %v444, 112
    %v459 = vadd.s32 %v444, 120
    %v460 = vstv %s442
    %v461 = vadd.s32 %v460, %v444
    %v462 = vadd.s32 %v460, %v445
    %v463 = vadd.s32 %v460, %v446
    %v464 = vadd.s32 %v460, %v447
    %v465 = vadd.s32 %v460, %v448
    %v466 = vadd.s32 %v460, %v449
    %v467 = vadd.s32 %v460, %v450
    %v468 = vadd.s32 %v460, %v451
    %v469 = vadd.s32 %v460, %v452
    %v470 = vadd.s32 %v460, %v453
    %v471 = vadd.s32 %v460, %v454
    %v472 = vadd.s32 %v460, %v455
    %v473 = vadd.s32 %v460, %v456
    %v474 = vadd.s32 %v460, %v457
    %v475 = vadd.s32 %v460, %v458
    %v476 = vadd.s32 %v460, %v459
    %vm477 = vcmp.lt.s32.totalorder %v461, 16
    %vm478 = vcmp.lt.s32.totalorder %v462, 16
    %vm479 = vcmp.lt.s32.totalorder %v463, 16
    %vm480 = vcmp.lt.s32.totalorder %v464, 16
    %vm481 = vcmp.lt.s32.totalorder %v465, 16
    %vm482 = vcmp.lt.s32.totalorder %v466, 16
    %vm483 = vcmp.lt.s32.totalorder %v467, 16
    %vm484 = vcmp.lt.s32.totalorder %v468, 16
    %vm485 = vcmp.lt.s32.totalorder %v469, 16
    %vm486 = vcmp.lt.s32.totalorder %v470, 16
    %vm487 = vcmp.lt.s32.totalorder %v471, 16
    %vm488 = vcmp.lt.s32.totalorder %v472, 16
    %vm489 = vcmp.lt.s32.totalorder %v473, 16
    %vm490 = vcmp.lt.s32.totalorder %v474, 16
    %vm491 = vcmp.lt.s32.totalorder %v475, 16
    %vm492 = vcmp.lt.s32.totalorder %v476, 16
    %v493 = vsel %vm477, %v379, 0.0
    %v494 = vsel %vm478, %v382, 0.0
    %v495 = vsel %vm479, %v385, 0.0
    %v496 = vsel %vm480, %v388, 0.0
    %v497 = vsel %vm481, %v391, 0.0
    %v498 = vsel %vm482, %v394, 0.0
    %v499 = vsel %vm483, %v397, 0.0
    %v500 = vsel %vm484, %v400, 0.0
    %v501 = vsel %vm485, %v403, 0.0
    %v502 = vsel %vm486, %v406, 0.0
    %v503 = vsel %vm487, %v409, 0.0
    %v504 = vsel %vm488, %v412, 0.0
    %v505 = vsel %vm489, %v415, 0.0
    %v506 = vsel %vm490, %v418, 0.0
    %v507 = vsel %vm491, %v421, 0.0
    %v508 = vsel %vm492, %v424, 0.0
    %v509 = vadd.f32 %v493, %v494
    %v510 = vadd.f32 %v509, %v495
    %v511 = vadd.f32 %v510, %v496
    %v512 = vadd.f32 %v511, %v497
    %v513 = vadd.f32 %v512, %v498
    %v514 = vadd.f32 %v513, %v499
    %v515 = vadd.f32 %v514, %v500
    %v516 = vadd.f32 %v515, %v501
    %v517 = vadd.f32 %v516, %v502
    %v518 = vadd.f32 %v517, %v503
    %v519 = vadd.f32 %v518, %v504
    %v520 = vadd.f32 %v519, %v505
    %v521 = vadd.f32 %v520, %v506
    %v522 = vadd.f32 %v521, %v507
    %v523 = vadd.f32 %v522, %v508
    %v524 = vrot.slane %v523, 4
    %v525 = vadd.f32 %v523, %v524
    %v526 = vrot.slane %v525, 2
    %v527 = vadd.f32 %v525, %v526
    %v528 = vrot.slane %v527, 1
    %v529 = vadd.f32 %v527, %v528
    %530 = vst [vmem:[%s11] sm:$0x1] %v529
    %v531 = vmul.f32 %v493, %v493
    %v532 = vmul.f32 %v494, %v494
    %v533 = vmul.f32 %v495, %v495
    %v534 = vmul.f32 %v496, %v496
    %v535 = vmul.f32 %v497, %v497
    %v536 = vmul.f32 %v498, %v498
    %v537 = vmul.f32 %v499, %v499
    %v538 = vmul.f32 %v500, %v500
    %v539 = vmul.f32 %v501, %v501
    %v540 = vmul.f32 %v502, %v502
    %v541 = vmul.f32 %v503, %v503
    %v542 = vmul.f32 %v504, %v504
    %v543 = vmul.f32 %v505, %v505
    %v544 = vmul.f32 %v506, %v506
    %v545 = vmul.f32 %v507, %v507
    %v546 = vmul.f32 %v508, %v508
    %v547 = vadd.f32 %v531, %v532
    %v548 = vadd.f32 %v547, %v533
    %v549 = vadd.f32 %v548, %v534
    %v550 = vadd.f32 %v549, %v535
    %v551 = vadd.f32 %v550, %v536
    %v552 = vadd.f32 %v551, %v537
    %v553 = vadd.f32 %v552, %v538
    %v554 = vadd.f32 %v553, %v539
    %v555 = vadd.f32 %v554, %v540
    %v556 = vadd.f32 %v555, %v541
    %v557 = vadd.f32 %v556, %v542
    %v558 = vadd.f32 %v557, %v543
    %v559 = vadd.f32 %v558, %v544
    %v560 = vadd.f32 %v559, %v545
    %v561 = vadd.f32 %v560, %v546
    %v562 = vrot.slane %v561, 4
    %v563 = vadd.f32 %v561, %v562
    %v564 = vrot.slane %v563, 2
    %v565 = vadd.f32 %v563, %v564
    %v566 = vrot.slane %v565, 1
    %v567 = vadd.f32 %v565, %v566
    %568 = vst [vmem:[%s12] sm:$0x1] %v567
  $region49: #{gin_forward.4} parent=0 // pred_fallthru
    _
  // Predicated region
  $region50: #{gin_forward.4} parent=0 // pred_check
    _
  $region51: #{gin_forward.4} parent=0 // pred_check_branch
    %570 = sbr.rel (0) target = $region53
  $region52: #{gin_forward.4} parent=0 // pred_region
    _
  $region53: #{gin_forward.4} parent=0 // pred_fallthru
    _
  // Predicated region
  $region54: #{gin_forward.4} parent=0 // pred_check
    _
  $region55: #{gin_forward.4} parent=0 // pred_check_branch
    %572 = sbr.rel (0) target = $region57
  $region56: #{gin_forward.4} parent=0 // pred_region
    _
  $region57: #{gin_forward.4} parent=0 // pred_fallthru
    _
  // Predicated region
  $region58: #{gin_forward.4} parent=0 // pred_check
    _
  $region59: #{gin_forward.4} parent=0 // pred_check_branch
    %574 = sbr.rel (0) target = $region61
  $region60: #{gin_forward.4} parent=0 // pred_region
    _
  $region61: #{gin_forward.4} parent=0 // pred_fallthru
    _
  // Predicated region
  $region62: #{gin_forward.4} parent=0 // pred_check
    _
  $region63: #{gin_forward.4} parent=0 // pred_check_branch
    %576 = sbr.rel (0) target = $region65
  $region64: #{gin_forward.4} parent=0 // pred_region
    _
  $region65: #{gin_forward.4} parent=0 // pred_fallthru
    _
  // Predicated region
  $region66: #{gin_forward.4} parent=0 // pred_check
    _
  $region67: #{gin_forward.4} parent=0 // pred_check_branch
    %578 = sbr.rel (0) target = $region69
  $region68: #{gin_forward.4} parent=0 // pred_region
    _
  $region69: #{gin_forward.4} parent=0 // pred_fallthru
    _
  // Predicated region
  $region70: #{gin_forward.4} parent=0 // pred_check
    _
  $region71: #{gin_forward.4} parent=0 // pred_check_branch
    %580 = sbr.rel (0) target = $region73
  $region72: #{gin_forward.4} parent=0 // pred_region
    _
  $region73: #{gin_forward.4} parent=0 // pred_fallthru
    _

// kernel: gin_forward.5
$region0: #{gin_forward.5}
  #allocation0 [shape = 'u32[]', space=smem, size = 0x4, offset = 0x4, fixed_abs, tag = 'smem constant byte address 0x4 - core index']
  #allocation1 [shape = 'u32[72,128]{1,0:T(1,128)}', space=vmem, size = 0x9000, scoped, tag = 'internal scratch']
  #allocation2 [shape = 'f32[128,128]{1,0:T(8,128)}', space=vmem, size = 0x10000, scoped, tag = 'scratch operand']
  %s0 = inlined_call_operand.vmem [shape: bf16[128,128], index: 0, kind: input, shape index: {}]
  %s1 = inlined_call_operand.vmem [shape: f32[128,128], index: 1, kind: input, shape index: {}]
  %s2 = inlined_call_operand.vmem [shape: f32[1,128], index: 2, kind: input, shape index: {}]
  %s3 = inlined_call_operand.vmem [shape: f32[1,128], index: 3, kind: input, shape index: {}]
  %s4 = inlined_call_operand.vmem [shape: f32[1,128], index: 4, kind: input, shape index: {}]
  %s5 = inlined_call_operand.vmem [shape: f32[1,128], index: 5, kind: input, shape index: {}]
  %s6 = inlined_call_operand.vmem [shape: f32[128,128], index: 6, kind: input, shape index: {}]
  %s7 = inlined_call_operand.vmem [shape: f32[1,128], index: 7, kind: input, shape index: {}]
  %s8 = inlined_call_operand.vmem [shape: f32[128,128], index: 8, kind: input, shape index: {}]
  %s9 = inlined_call_operand.vmem [shape: f32[1,128], index: 9, kind: input, shape index: {}]
  %s10 = inlined_call_operand.vmem [shape: f32[128,128], index: 10, kind: output, shape index: {0}]
  %s11 = inlined_call_operand.vmem [shape: f32[1,1,128], index: 11, kind: output, shape index: {1}]
  %s12 = inlined_call_operand.vmem [shape: f32[1,1,128], index: 12, kind: output, shape index: {2}]
  %13 = xla_tuple %s10, %s11, %s12
  %s14 = sld [smem:[#allocation0]]
  $region74: #{gin_forward.5} parent=0
    _
  %s16 = ssub.s32 1, %s14
  %s17 = scalar_select 0, %s16, %s14
  // Predicated region
  $region2: #{gin_forward.5} parent=0 // pred_check
    _
  $region3: #{gin_forward.5} parent=0 // pred_check_branch
    %19 = sbr.rel (0) target = $region5
  $region4: #{gin_forward.5} parent=0 // pred_region
    _
  $region5: #{gin_forward.5} parent=0 // pred_fallthru
    _
  // Predicated region
  $region6: #{gin_forward.5} parent=0 // pred_check
    _
  $region7: #{gin_forward.5} parent=0 // pred_check_branch
    %21 = sbr.rel (0) target = $region9
  $region8: #{gin_forward.5} parent=0 // pred_region
    _
  $region9: #{gin_forward.5} parent=0 // pred_fallthru
    _
  // Predicated region
  $region10: #{gin_forward.5} parent=0 // pred_check
    _
  $region11: #{gin_forward.5} parent=0 // pred_check_branch
    %23 = sbr.rel (0) target = $region13
  $region12: #{gin_forward.5} parent=0 // pred_region
    _
  $region13: #{gin_forward.5} parent=0 // pred_fallthru
    _
  // Predicated region
  $region14: #{gin_forward.5} parent=0 // pred_check
    _
  $region15: #{gin_forward.5} parent=0 // pred_check_branch
    %25 = sbr.rel (0) target = $region17
  $region16: #{gin_forward.5} parent=0 // pred_region
    _
  $region17: #{gin_forward.5} parent=0 // pred_fallthru
    _
  // Predicated region
  $region18: #{gin_forward.5} parent=0 // pred_check
    _
  $region19: #{gin_forward.5} parent=0 // pred_check_branch
    %27 = sbr.rel (0) target = $region21
  $region20: #{gin_forward.5} parent=0 // pred_region
    _
  $region21: #{gin_forward.5} parent=0 // pred_fallthru
    _
  // Predicated region
  $region22: #{gin_forward.5} parent=0 // pred_check
    _
  $region23: #{gin_forward.5} parent=0 // pred_check_branch
    %29 = sbr.rel (0) target = $region25
  $region24: #{gin_forward.5} parent=0 // pred_region
    _
  $region25: #{gin_forward.5} parent=0 // pred_fallthru
    _
  // Predicated region
  $region26: #{gin_forward.5} parent=0 // pred_check
    _
  $region27: #{gin_forward.5} parent=0 // pred_check_branch
    %31 = sbr.rel (0) target = $region29
  $region28: #{gin_forward.5} parent=0 // pred_region
    _
  $region29: #{gin_forward.5} parent=0 // pred_fallthru
    _
  // Predicated region
  $region30: #{gin_forward.5} parent=0 // pred_check
    _
  $region31: #{gin_forward.5} parent=0 // pred_check_branch
    %33 = sbr.rel (0) target = $region33
  $region32: #{gin_forward.5} parent=0 // pred_region
    _
  $region33: #{gin_forward.5} parent=0 // pred_fallthru
    _
  // Predicated region
  $region34: #{gin_forward.5} parent=0 // pred_check
    _
  $region35: #{gin_forward.5} parent=0 // pred_check_branch
    %35 = sbr.rel (0) target = $region37
  $region36: #{gin_forward.5} parent=0 // pred_region
    _
  $region37: #{gin_forward.5} parent=0 // pred_fallthru
    _
  // Predicated region
  $region38: #{gin_forward.5} parent=0 // pred_check
    _
  $region39: #{gin_forward.5} parent=0 // pred_check_branch
    %37 = sbr.rel (0) target = $region41
  $region40: #{gin_forward.5} parent=0 // pred_region
    _
  $region41: #{gin_forward.5} parent=0 // pred_fallthru
    _
  %p38 = scmp.eq.s32.totalorder 0, 0
  // Predicated region
  $region42: #{gin_forward.5} parent=0 // pred_check
    %p39 = pneg %p38
  $region43: #{gin_forward.5} parent=0 // pred_check_branch
    %41 = sbr.rel (%p39) target = $region45
  $region44: #{gin_forward.5} parent=0 // pred_region
    %42 = vst [vmem:[#allocation2] sm:$0xff] 0.0
    %43 = vst [vmem:[#allocation2 + $0x8] sm:$0xff] 0.0
    %44 = vst [vmem:[#allocation2 + $0x10] sm:$0xff] 0.0
    %45 = vst [vmem:[#allocation2 + $0x18] sm:$0xff] 0.0
    %46 = vst [vmem:[#allocation2 + $0x20] sm:$0xff] 0.0
    %47 = vst [vmem:[#allocation2 + $0x28] sm:$0xff] 0.0
    %48 = vst [vmem:[#allocation2 + $0x30] sm:$0xff] 0.0
    %49 = vst [vmem:[#allocation2 + $0x38] sm:$0xff] 0.0
    %50 = vst [vmem:[#allocation2 + $0x40] sm:$0xff] 0.0
    %51 = vst [vmem:[#allocation2 + $0x48] sm:$0xff] 0.0
    %52 = vst [vmem:[#allocation2 + $0x50] sm:$0xff] 0.0
    %53 = vst [vmem:[#allocation2 + $0x58] sm:$0xff] 0.0
    %54 = vst [vmem:[#allocation2 + $0x60] sm:$0xff] 0.0
    %55 = vst [vmem:[#allocation2 + $0x68] sm:$0xff] 0.0
    %56 = vst [vmem:[#allocation2 + $0x70] sm:$0xff] 0.0
    %57 = vst [vmem:[#allocation2 + $0x78] sm:$0xff] 0.0
  $region45: #{gin_forward.5} parent=0 // pred_fallthru
    _
  %s58 = smul.u32 0, 128
  %s59 = scalar_lea.vmem %s1, %s58
  %v60 = vld [vmem:[%s59] sm:$0xff]
  %v61 = vld [vmem:[%s59 + $0x8] sm:$0xff]
  %v62 = vld [vmem:[%s59 + $0x10] sm:$0xff]
  %v63 = vld [vmem:[%s59 + $0x18] sm:$0xff]
  %v64 = vld [vmem:[%s59 + $0x20] sm:$0xff]
  %v65 = vld [vmem:[%s59 + $0x28] sm:$0xff]
  %v66 = vld [vmem:[%s59 + $0x30] sm:$0xff]
  %v67 = vld [vmem:[%s59 + $0x38] sm:$0xff]
  %v68 = vld [vmem:[%s59 + $0x40] sm:$0xff]
  %v69 = vld [vmem:[%s59 + $0x48] sm:$0xff]
  %v70 = vld [vmem:[%s59 + $0x50] sm:$0xff]
  %v71 = vld [vmem:[%s59 + $0x58] sm:$0xff]
  %v72 = vld [vmem:[%s59 + $0x60] sm:$0xff]
  %v73 = vld [vmem:[%s59 + $0x68] sm:$0xff]
  %v74 = vld [vmem:[%s59 + $0x70] sm:$0xff]
  %v75 = vld [vmem:[%s59 + $0x78] sm:$0xff]
  %v76 = vld [vmem:[%s2] sm:$0x1]
  %v78 = vperm.slane %v76, 0
  %v80 = vsub.f32 %v60, %v78
  %v81 = vsub.f32 %v61, %v78
  %v82 = vsub.f32 %v62, %v78
  %v83 = vsub.f32 %v63, %v78
  %v84 = vsub.f32 %v64, %v78
  %v85 = vsub.f32 %v65, %v78
  %v86 = vsub.f32 %v66, %v78
  %v87 = vsub.f32 %v67, %v78
  %v88 = vsub.f32 %v68, %v78
  %v89 = vsub.f32 %v69, %v78
  %v90 = vsub.f32 %v70, %v78
  %v91 = vsub.f32 %v71, %v78
  %v92 = vsub.f32 %v72, %v78
  %v93 = vsub.f32 %v73, %v78
  %v94 = vsub.f32 %v74, %v78
  %v95 = vsub.f32 %v75, %v78
  %v96 = vld [vmem:[%s3] sm:$0x1]
  %v98 = vperm.slane %v96, 0
  %v100 = vmul.f32 %v80, %v98
  %v101 = vmul.f32 %v81, %v98
  %v102 = vmul.f32 %v82, %v98
  %v103 = vmul.f32 %v83, %v98
  %v104 = vmul.f32 %v84, %v98
  %v105 = vmul.f32 %v85, %v98
  %v106 = vmul.f32 %v86, %v98
  %v107 = vmul.f32 %v87, %v98
  %v108 = vmul.f32 %v88, %v98
  %v109 = vmul.f32 %v89, %v98
  %v110 = vmul.f32 %v90, %v98
  %v111 = vmul.f32 %v91, %v98
  %v112 = vmul.f32 %v92, %v98
  %v113 = vmul.f32 %v93, %v98
  %v114 = vmul.f32 %v94, %v98
  %v115 = vmul.f32 %v95, %v98
  %v116 = vld [vmem:[%s4] sm:$0x1]
  %v118 = vperm.slane %v116, 0
  %v120 = vmul.f32 %v100, %v118
  %v121 = vmul.f32 %v101, %v118
  %v122 = vmul.f32 %v102, %v118
  %v123 = vmul.f32 %v103, %v118
  %v124 = vmul.f32 %v104, %v118
  %v125 = vmul.f32 %v105, %v118
  %v126 = vmul.f32 %v106, %v118
  %v127 = vmul.f32 %v107, %v118
  %v128 = vmul.f32 %v108, %v118
  %v129 = vmul.f32 %v109, %v118
  %v130 = vmul.f32 %v110, %v118
  %v131 = vmul.f32 %v111, %v118
  %v132 = vmul.f32 %v112, %v118
  %v133 = vmul.f32 %v113, %v118
  %v134 = vmul.f32 %v114, %v118
  %v135 = vmul.f32 %v115, %v118
  %v136 = vld [vmem:[%s5] sm:$0x1]
  %v138 = vperm.slane %v136, 0
  %v140 = vadd.f32 %v120, %v138
  %v141 = vadd.f32 %v121, %v138
  %v142 = vadd.f32 %v122, %v138
  %v143 = vadd.f32 %v123, %v138
  %v144 = vadd.f32 %v124, %v138
  %v145 = vadd.f32 %v125, %v138
  %v146 = vadd.f32 %v126, %v138
  %v147 = vadd.f32 %v127, %v138
  %v148 = vadd.f32 %v128, %v138
  %v149 = vadd.f32 %v129, %v138
  %v150 = vadd.f32 %v130, %v138
  %v151 = vadd.f32 %v131, %v138
  %v152 = vadd.f32 %v132, %v138
  %v153 = vadd.f32 %v133, %v138
  %v154 = vadd.f32 %v134, %v138
  %v155 = vadd.f32 %v135, %v138
  %v156 = vmax.f32 %v140, 0.0
  %v157 = vmax.f32 %v141, 0.0
  %v158 = vmax.f32 %v142, 0.0
  %v159 = vmax.f32 %v143, 0.0
  %v160 = vmax.f32 %v144, 0.0
  %v161 = vmax.f32 %v145, 0.0
  %v162 = vmax.f32 %v146, 0.0
  %v163 = vmax.f32 %v147, 0.0
  %v164 = vmax.f32 %v148, 0.0
  %v165 = vmax.f32 %v149, 0.0
  %v166 = vmax.f32 %v150, 0.0
  %v167 = vmax.f32 %v151, 0.0
  %v168 = vmax.f32 %v152, 0.0
  %v169 = vmax.f32 %v153, 0.0
  %v170 = vmax.f32 %v154, 0.0
  %v171 = vmax.f32 %v155, 0.0
  %v172 = vld [vmem:[#allocation2] sm:$0xff]
  %v173 = vld [vmem:[#allocation2 + $0x8] sm:$0xff]
  %v174 = vld [vmem:[#allocation2 + $0x10] sm:$0xff]
  %v175 = vld [vmem:[#allocation2 + $0x18] sm:$0xff]
  %v176 = vld [vmem:[#allocation2 + $0x20] sm:$0xff]
  %v177 = vld [vmem:[#allocation2 + $0x28] sm:$0xff]
  %v178 = vld [vmem:[#allocation2 + $0x30] sm:$0xff]
  %v179 = vld [vmem:[#allocation2 + $0x38] sm:$0xff]
  %v180 = vld [vmem:[#allocation2 + $0x40] sm:$0xff]
  %v181 = vld [vmem:[#allocation2 + $0x48] sm:$0xff]
  %v182 = vld [vmem:[#allocation2 + $0x50] sm:$0xff]
  %v183 = vld [vmem:[#allocation2 + $0x58] sm:$0xff]
  %v184 = vld [vmem:[#allocation2 + $0x60] sm:$0xff]
  %v185 = vld [vmem:[#allocation2 + $0x68] sm:$0xff]
  %v186 = vld [vmem:[#allocation2 + $0x70] sm:$0xff]
  %v187 = vld [vmem:[#allocation2 + $0x78] sm:$0xff]
  %v188 = vld [vmem:[%s0] sm:$0xf]
  %v189 = vld [vmem:[%s0 + $0x4] sm:$0xf]
  %v190 = vld [vmem:[%s0 + $0x8] sm:$0xf]
  %v191 = vld [vmem:[%s0 + $0xc] sm:$0xf]
  %v192 = vld [vmem:[%s0 + $0x10] sm:$0xf]
  %v193 = vld [vmem:[%s0 + $0x14] sm:$0xf]
  %v194 = vld [vmem:[%s0 + $0x18] sm:$0xf]
  %v195 = vld [vmem:[%s0 + $0x1c] sm:$0xf]
  %v196 = vld [vmem:[%s0 + $0x20] sm:$0xf]
  %v197 = vld [vmem:[%s0 + $0x24] sm:$0xf]
  %v198 = vld [vmem:[%s0 + $0x28] sm:$0xf]
  %v199 = vld [vmem:[%s0 + $0x2c] sm:$0xf]
  %v200 = vld [vmem:[%s0 + $0x30] sm:$0xf]
  %v201 = vld [vmem:[%s0 + $0x34] sm:$0xf]
  %v202 = vld [vmem:[%s0 + $0x38] sm:$0xf]
  %v203 = vld [vmem:[%s0 + $0x3c] sm:$0xf]
  %v204 = vunpack.c.l.bf16 %v188
  %v205 = vunpack.c.l.bf16 %v189
  %v206 = vunpack.c.l.bf16 %v190
  %v207 = vunpack.c.l.bf16 %v191
  %v208 = vunpack.c.l.bf16 %v192
  %v209 = vunpack.c.l.bf16 %v193
  %v210 = vunpack.c.l.bf16 %v194
  %v211 = vunpack.c.l.bf16 %v195
  %v212 = vunpack.c.l.bf16 %v196
  %v213 = vunpack.c.l.bf16 %v197
  %v214 = vunpack.c.l.bf16 %v198
  %v215 = vunpack.c.l.bf16 %v199
  %v216 = vunpack.c.l.bf16 %v200
  %v217 = vunpack.c.l.bf16 %v201
  %v218 = vunpack.c.l.bf16 %v202
  %v219 = vunpack.c.l.bf16 %v203
  %220 = vmatpush.msra.mxu0 %v171
  %221 = vmatpush.msra.mxu0 %v170
  %222 = vmatpush.msra.mxu0 %v169
  %223 = vmatpush.msra.mxu0 %v168
  %224 = vmatpush.msra.mxu0 %v167
  %225 = vmatpush.msra.mxu0 %v166
  %226 = vmatpush.msra.mxu0 %v165
  %227 = vmatpush.msra.mxu0 %v164
  %228 = vmatpush.msra.mxu0 %v163
  %229 = vmatpush.msra.mxu0 %v162
  %230 = vmatpush.msra.mxu0 %v161
  %231 = vmatpush.msra.mxu0 %v160
  %232 = vmatpush.msra.mxu0 %v159
  %233 = vmatpush.msra.mxu0 %v158
  %234 = vmatpush.msra.mxu0 %v157
  %235 = vmatpush.msra.mxu0 %v156
  %236 = vmatmul.f32.gmra.mxu0 %v204
  %v237 = vpop.f32.mrf.mxu0
  %v238 = vadd.f32 0.0, %v237
  %239 = vmatmul.f32.gmra.mxu0 %v205
  %v240 = vpop.f32.mrf.mxu0
  %v241 = vadd.f32 0.0, %v240
  %242 = vmatmul.f32.gmra.mxu0 %v206
  %v243 = vpop.f32.mrf.mxu0
  %v244 = vadd.f32 0.0, %v243
  %245 = vmatmul.f32.gmra.mxu0 %v207
  %v246 = vpop.f32.mrf.mxu0
  %v247 = vadd.f32 0.0, %v246
  %248 = vmatmul.f32.gmra.mxu0 %v208
  %v249 = vpop.f32.mrf.mxu0
  %v250 = vadd.f32 0.0, %v249
  %251 = vmatmul.f32.gmra.mxu0 %v209
  %v252 = vpop.f32.mrf.mxu0
  %v253 = vadd.f32 0.0, %v252
  %254 = vmatmul.f32.gmra.mxu0 %v210
  %v255 = vpop.f32.mrf.mxu0
  %v256 = vadd.f32 0.0, %v255
  %257 = vmatmul.f32.gmra.mxu0 %v211
  %v258 = vpop.f32.mrf.mxu0
  %v259 = vadd.f32 0.0, %v258
  %260 = vmatmul.f32.gmra.mxu0 %v212
  %v261 = vpop.f32.mrf.mxu0
  %v262 = vadd.f32 0.0, %v261
  %263 = vmatmul.f32.gmra.mxu0 %v213
  %v264 = vpop.f32.mrf.mxu0
  %v265 = vadd.f32 0.0, %v264
  %266 = vmatmul.f32.gmra.mxu0 %v214
  %v267 = vpop.f32.mrf.mxu0
  %v268 = vadd.f32 0.0, %v267
  %269 = vmatmul.f32.gmra.mxu0 %v215
  %v270 = vpop.f32.mrf.mxu0
  %v271 = vadd.f32 0.0, %v270
  %272 = vmatmul.f32.gmra.mxu0 %v216
  %v273 = vpop.f32.mrf.mxu0
  %v274 = vadd.f32 0.0, %v273
  %275 = vmatmul.f32.gmra.mxu0 %v217
  %v276 = vpop.f32.mrf.mxu0
  %v277 = vadd.f32 0.0, %v276
  %278 = vmatmul.f32.gmra.mxu0 %v218
  %v279 = vpop.f32.mrf.mxu0
  %v280 = vadd.f32 0.0, %v279
  %281 = vmatmul.f32.gmra.mxu0 %v219
  %v282 = vpop.f32.mrf.mxu0
  %v283 = vadd.f32 0.0, %v282
  %284 = vdwg.mxu0
  %v285 = vadd.f32 %v172, %v238
  %v286 = vadd.f32 %v173, %v241
  %v287 = vadd.f32 %v174, %v244
  %v288 = vadd.f32 %v175, %v247
  %v289 = vadd.f32 %v176, %v250
  %v290 = vadd.f32 %v177, %v253
  %v291 = vadd.f32 %v178, %v256
  %v292 = vadd.f32 %v179, %v259
  %v293 = vadd.f32 %v180, %v262
  %v294 = vadd.f32 %v181, %v265
  %v295 = vadd.f32 %v182, %v268
  %v296 = vadd.f32 %v183, %v271
  %v297 = vadd.f32 %v184, %v274
  %v298 = vadd.f32 %v185, %v277
  %v299 = vadd.f32 %v186, %v280
  %v300 = vadd.f32 %v187, %v283
  %301 = vst [vmem:[#allocation2] sm:$0xff] %v285
  %302 = vst [vmem:[#allocation2 + $0x8] sm:$0xff] %v286
  %303 = vst [vmem:[#allocation2 + $0x10] sm:$0xff] %v287
  %304 = vst [vmem:[#allocation2 + $0x18] sm:$0xff] %v288
  %305 = vst [vmem:[#allocation2 + $0x20] sm:$0xff] %v289
  %306 = vst [vmem:[#allocation2 + $0x28] sm:$0xff] %v290
  %307 = vst [vmem:[#allocation2 + $0x30] sm:$0xff] %v291
  %308 = vst [vmem:[#allocation2 + $0x38] sm:$0xff] %v292
  %309 = vst [vmem:[#allocation2 + $0x40] sm:$0xff] %v293
  %310 = vst [vmem:[#allocation2 + $0x48] sm:$0xff] %v294
  %311 = vst [vmem:[#allocation2 + $0x50] sm:$0xff] %v295
  %312 = vst [vmem:[#allocation2 + $0x58] sm:$0xff] %v296
  %313 = vst [vmem:[#allocation2 + $0x60] sm:$0xff] %v297
  %314 = vst [vmem:[#allocation2 + $0x68] sm:$0xff] %v298
  %315 = vst [vmem:[#allocation2 + $0x70] sm:$0xff] %v299
  %316 = vst [vmem:[#allocation2 + $0x78] sm:$0xff] %v300
  // Predicated region
  $region46: #{gin_forward.5} parent=0 // pred_check
    %p317 = pneg %p38
  $region47: #{gin_forward.5} parent=0 // pred_check_branch
    %319 = sbr.rel (%p317) target = $region49
  $region48: #{gin_forward.5} parent=0 // pred_region
    %v320 = vld [vmem:[#allocation2] sm:$0xff]
    %v321 = vld [vmem:[#allocation2 + $0x8] sm:$0xff]
    %v322 = vld [vmem:[#allocation2 + $0x10] sm:$0xff]
    %v323 = vld [vmem:[#allocation2 + $0x18] sm:$0xff]
    %v324 = vld [vmem:[#allocation2 + $0x20] sm:$0xff]
    %v325 = vld [vmem:[#allocation2 + $0x28] sm:$0xff]
    %v326 = vld [vmem:[#allocation2 + $0x30] sm:$0xff]
    %v327 = vld [vmem:[#allocation2 + $0x38] sm:$0xff]
    %v328 = vld [vmem:[#allocation2 + $0x40] sm:$0xff]
    %v329 = vld [vmem:[#allocation2 + $0x48] sm:$0xff]
    %v330 = vld [vmem:[#allocation2 + $0x50] sm:$0xff]
    %v331 = vld [vmem:[#allocation2 + $0x58] sm:$0xff]
    %v332 = vld [vmem:[#allocation2 + $0x60] sm:$0xff]
    %v333 = vld [vmem:[#allocation2 + $0x68] sm:$0xff]
    %v334 = vld [vmem:[#allocation2 + $0x70] sm:$0xff]
    %v335 = vld [vmem:[#allocation2 + $0x78] sm:$0xff]
    %v336 = vld [vmem:[%s6] sm:$0xff]
    %v337 = vld [vmem:[%s6 + $0x8] sm:$0xff]
    %v338 = vld [vmem:[%s6 + $0x10] sm:$0xff]
    %v339 = vld [vmem:[%s6 + $0x18] sm:$0xff]
    %v340 = vld [vmem:[%s6 + $0x20] sm:$0xff]
    %v341 = vld [vmem:[%s6 + $0x28] sm:$0xff]
    %v342 = vld [vmem:[%s6 + $0x30] sm:$0xff]
    %v343 = vld [vmem:[%s6 + $0x38] sm:$0xff]
    %v344 = vld [vmem:[%s6 + $0x40] sm:$0xff]
    %v345 = vld [vmem:[%s6 + $0x48] sm:$0xff]
    %v346 = vld [vmem:[%s6 + $0x50] sm:$0xff]
    %v347 = vld [vmem:[%s6 + $0x58] sm:$0xff]
    %v348 = vld [vmem:[%s6 + $0x60] sm:$0xff]
    %v349 = vld [vmem:[%s6 + $0x68] sm:$0xff]
    %v350 = vld [vmem:[%s6 + $0x70] sm:$0xff]
    %v351 = vld [vmem:[%s6 + $0x78] sm:$0xff]
    %v352 = vld [vmem:[%s7] sm:$0x1]
    %v354 = vperm.slane %v352, 0
    %356 = vmatpush.msra.mxu0 %v351
    %357 = vmatpush.msra.mxu0 %v350
    %358 = vmatpush.msra.mxu0 %v349
    %359 = vmatpush.msra.mxu0 %v348
    %360 = vmatpush.msra.mxu0 %v347
    %361 = vmatpush.msra.mxu0 %v346
    %362 = vmatpush.msra.mxu0 %v345
    %363 = vmatpush.msra.mxu0 %v344
    %364 = vmatpush.msra.mxu0 %v343
    %365 = vmatpush.msra.mxu0 %v342
    %366 = vmatpush.msra.mxu0 %v341
    %367 = vmatpush.msra.mxu0 %v340
    %368 = vmatpush.msra.mxu0 %v339
    %369 = vmatpush.msra.mxu0 %v338
    %370 = vmatpush.msra.mxu0 %v337
    %371 = vmatpush.msra.mxu0 %v336
    %372 = vmatmul.f32.gmra.mxu0 %v320
    %v373 = vpop.f32.mrf.mxu0
    %v374 = vadd.f32 %v354, %v373
    %375 = vmatmul.f32.gmra.mxu0 %v321
    %v376 = vpop.f32.mrf.mxu0
    %v377 = vadd.f32 %v354, %v376
    %378 = vmatmul.f32.gmra.mxu0 %v322
    %v379 = vpop.f32.mrf.mxu0
    %v380 = vadd.f32 %v354, %v379
    %381 = vmatmul.f32.gmra.mxu0 %v323
    %v382 = vpop.f32.mrf.mxu0
    %v383 = vadd.f32 %v354, %v382
    %384 = vmatmul.f32.gmra.mxu0 %v324
    %v385 = vpop.f32.mrf.mxu0
    %v386 = vadd.f32 %v354, %v385
    %387 = vmatmul.f32.gmra.mxu0 %v325
    %v388 = vpop.f32.mrf.mxu0
    %v389 = vadd.f32 %v354, %v388
    %390 = vmatmul.f32.gmra.mxu0 %v326
    %v391 = vpop.f32.mrf.mxu0
    %v392 = vadd.f32 %v354, %v391
    %393 = vmatmul.f32.gmra.mxu0 %v327
    %v394 = vpop.f32.mrf.mxu0
    %v395 = vadd.f32 %v354, %v394
    %396 = vmatmul.f32.gmra.mxu0 %v328
    %v397 = vpop.f32.mrf.mxu0
    %v398 = vadd.f32 %v354, %v397
    %399 = vmatmul.f32.gmra.mxu0 %v329
    %v400 = vpop.f32.mrf.mxu0
    %v401 = vadd.f32 %v354, %v400
    %402 = vmatmul.f32.gmra.mxu0 %v330
    %v403 = vpop.f32.mrf.mxu0
    %v404 = vadd.f32 %v354, %v403
    %405 = vmatmul.f32.gmra.mxu0 %v331
    %v406 = vpop.f32.mrf.mxu0
    %v407 = vadd.f32 %v354, %v406
    %408 = vmatmul.f32.gmra.mxu0 %v332
    %v409 = vpop.f32.mrf.mxu0
    %v410 = vadd.f32 %v354, %v409
    %411 = vmatmul.f32.gmra.mxu0 %v333
    %v412 = vpop.f32.mrf.mxu0
    %v413 = vadd.f32 %v354, %v412
    %414 = vmatmul.f32.gmra.mxu0 %v334
    %v415 = vpop.f32.mrf.mxu0
    %v416 = vadd.f32 %v354, %v415
    %417 = vmatmul.f32.gmra.mxu0 %v335
    %v418 = vpop.f32.mrf.mxu0
    %v419 = vadd.f32 %v354, %v418
    %420 = vdwg.mxu0
    %v421 = vmax.f32 %v374, 0.0
    %v422 = vmax.f32 %v377, 0.0
    %v423 = vmax.f32 %v380, 0.0
    %v424 = vmax.f32 %v383, 0.0
    %v425 = vmax.f32 %v386, 0.0
    %v426 = vmax.f32 %v389, 0.0
    %v427 = vmax.f32 %v392, 0.0
    %v428 = vmax.f32 %v395, 0.0
    %v429 = vmax.f32 %v398, 0.0
    %v430 = vmax.f32 %v401, 0.0
    %v431 = vmax.f32 %v404, 0.0
    %v432 = vmax.f32 %v407, 0.0
    %v433 = vmax.f32 %v410, 0.0
    %v434 = vmax.f32 %v413, 0.0
    %v435 = vmax.f32 %v416, 0.0
    %v436 = vmax.f32 %v419, 0.0
    %v437 = vld [vmem:[%s8] sm:$0xff]
    %v438 = vld [vmem:[%s8 + $0x8] sm:$0xff]
    %v439 = vld [vmem:[%s8 + $0x10] sm:$0xff]
    %v440 = vld [vmem:[%s8 + $0x18] sm:$0xff]
    %v441 = vld [vmem:[%s8 + $0x20] sm:$0xff]
    %v442 = vld [vmem:[%s8 + $0x28] sm:$0xff]
    %v443 = vld [vmem:[%s8 + $0x30] sm:$0xff]
    %v444 = vld [vmem:[%s8 + $0x38] sm:$0xff]
    %v445 = vld [vmem:[%s8 + $0x40] sm:$0xff]
    %v446 = vld [vmem:[%s8 + $0x48] sm:$0xff]
    %v447 = vld [vmem:[%s8 + $0x50] sm:$0xff]
    %v448 = vld [vmem:[%s8 + $0x58] sm:$0xff]
    %v449 = vld [vmem:[%s8 + $0x60] sm:$0xff]
    %v450 = vld [vmem:[%s8 + $0x68] sm:$0xff]
    %v451 = vld [vmem:[%s8 + $0x70] sm:$0xff]
    %v452 = vld [vmem:[%s8 + $0x78] sm:$0xff]
    %v453 = vld [vmem:[%s9] sm:$0x1]
    %v455 = vperm.slane %v453, 0
    %457 = vmatpush.msra.mxu0 %v452
    %458 = vmatpush.msra.mxu0 %v451
    %459 = vmatpush.msra.mxu0 %v450
    %460 = vmatpush.msra.mxu0 %v449
    %461 = vmatpush.msra.mxu0 %v448
    %462 = vmatpush.msra.mxu0 %v447
    %463 = vmatpush.msra.mxu0 %v446
    %464 = vmatpush.msra.mxu0 %v445
    %465 = vmatpush.msra.mxu0 %v444
    %466 = vmatpush.msra.mxu0 %v443
    %467 = vmatpush.msra.mxu0 %v442
    %468 = vmatpush.msra.mxu0 %v441
    %469 = vmatpush.msra.mxu0 %v440
    %470 = vmatpush.msra.mxu0 %v439
    %471 = vmatpush.msra.mxu0 %v438
    %472 = vmatpush.msra.mxu0 %v437
    %473 = vmatmul.f32.gmra.mxu0 %v421
    %v474 = vpop.f32.mrf.mxu0
    %v475 = vadd.f32 %v455, %v474
    %476 = vmatmul.f32.gmra.mxu0 %v422
    %v477 = vpop.f32.mrf.mxu0
    %v478 = vadd.f32 %v455, %v477
    %479 = vmatmul.f32.gmra.mxu0 %v423
    %v480 = vpop.f32.mrf.mxu0
    %v481 = vadd.f32 %v455, %v480
    %482 = vmatmul.f32.gmra.mxu0 %v424
    %v483 = vpop.f32.mrf.mxu0
    %v484 = vadd.f32 %v455, %v483
    %485 = vmatmul.f32.gmra.mxu0 %v425
    %v486 = vpop.f32.mrf.mxu0
    %v487 = vadd.f32 %v455, %v486
    %488 = vmatmul.f32.gmra.mxu0 %v426
    %v489 = vpop.f32.mrf.mxu0
    %v490 = vadd.f32 %v455, %v489
    %491 = vmatmul.f32.gmra.mxu0 %v427
    %v492 = vpop.f32.mrf.mxu0
    %v493 = vadd.f32 %v455, %v492
    %494 = vmatmul.f32.gmra.mxu0 %v428
    %v495 = vpop.f32.mrf.mxu0
    %v496 = vadd.f32 %v455, %v495
    %497 = vmatmul.f32.gmra.mxu0 %v429
    %v498 = vpop.f32.mrf.mxu0
    %v499 = vadd.f32 %v455, %v498
    %500 = vmatmul.f32.gmra.mxu0 %v430
    %v501 = vpop.f32.mrf.mxu0
    %v502 = vadd.f32 %v455, %v501
    %503 = vmatmul.f32.gmra.mxu0 %v431
    %v504 = vpop.f32.mrf.mxu0
    %v505 = vadd.f32 %v455, %v504
    %506 = vmatmul.f32.gmra.mxu0 %v432
    %v507 = vpop.f32.mrf.mxu0
    %v508 = vadd.f32 %v455, %v507
    %509 = vmatmul.f32.gmra.mxu0 %v433
    %v510 = vpop.f32.mrf.mxu0
    %v511 = vadd.f32 %v455, %v510
    %512 = vmatmul.f32.gmra.mxu0 %v434
    %v513 = vpop.f32.mrf.mxu0
    %v514 = vadd.f32 %v455, %v513
    %515 = vmatmul.f32.gmra.mxu0 %v435
    %v516 = vpop.f32.mrf.mxu0
    %v517 = vadd.f32 %v455, %v516
    %518 = vmatmul.f32.gmra.mxu0 %v436
    %v519 = vpop.f32.mrf.mxu0
    %v520 = vadd.f32 %v455, %v519
    %521 = vdwg.mxu0
    %522 = vst [vmem:[%s10] sm:$0xff] %v475
    %523 = vst [vmem:[%s10 + $0x8] sm:$0xff] %v478
    %524 = vst [vmem:[%s10 + $0x10] sm:$0xff] %v481
    %525 = vst [vmem:[%s10 + $0x18] sm:$0xff] %v484
    %526 = vst [vmem:[%s10 + $0x20] sm:$0xff] %v487
    %527 = vst [vmem:[%s10 + $0x28] sm:$0xff] %v490
    %528 = vst [vmem:[%s10 + $0x30] sm:$0xff] %v493
    %529 = vst [vmem:[%s10 + $0x38] sm:$0xff] %v496
    %530 = vst [vmem:[%s10 + $0x40] sm:$0xff] %v499
    %531 = vst [vmem:[%s10 + $0x48] sm:$0xff] %v502
    %532 = vst [vmem:[%s10 + $0x50] sm:$0xff] %v505
    %533 = vst [vmem:[%s10 + $0x58] sm:$0xff] %v508
    %534 = vst [vmem:[%s10 + $0x60] sm:$0xff] %v511
    %535 = vst [vmem:[%s10 + $0x68] sm:$0xff] %v514
    %536 = vst [vmem:[%s10 + $0x70] sm:$0xff] %v517
    %537 = vst [vmem:[%s10 + $0x78] sm:$0xff] %v520
    %s538 = smul.u32 0, 128
    %v539 = vlaneseq
    %v540 = vshrl.u32 %v539, 7
    %v541 = vadd.s32 %v540, 8
    %v542 = vadd.s32 %v540, 16
    %v543 = vadd.s32 %v540, 24
    %v544 = vadd.s32 %v540, 32
    %v545 = vadd.s32 %v540, 40
    %v546 = vadd.s32 %v540, 48
    %v547 = vadd.s32 %v540, 56
    %v548 = vadd.s32 %v540, 64
    %v549 = vadd.s32 %v540, 72
    %v550 = vadd.s32 %v540, 80
    %v551 = vadd.s32 %v540, 88
    %v552 = vadd.s32 %v540, 96
    %v553 = vadd.s32 %v540, 104
    %v554 = vadd.s32 %v540, 112
    %v555 = vadd.s32 %v540, 120
    %v556 = vstv %s538
    %v557 = vadd.s32 %v556, %v540
    %v558 = vadd.s32 %v556, %v541
    %v559 = vadd.s32 %v556, %v542
    %v560 = vadd.s32 %v556, %v543
    %v561 = vadd.s32 %v556, %v544
    %v562 = vadd.s32 %v556, %v545
    %v563 = vadd.s32 %v556, %v546
    %v564 = vadd.s32 %v556, %v547
    %v565 = vadd.s32 %v556, %v548
    %v566 = vadd.s32 %v556, %v549
    %v567 = vadd.s32 %v556, %v550
    %v568 = vadd.s32 %v556, %v551
    %v569 = vadd.s32 %v556, %v552
    %v570 = vadd.s32 %v556, %v553
    %v571 = vadd.s32 %v556, %v554
    %v572 = vadd.s32 %v556, %v555
    %vm573 = vcmp.lt.s32.totalorder %v557, 16
    %vm574 = vcmp.lt.s32.totalorder %v558, 16
    %vm575 = vcmp.lt.s32.totalorder %v559, 16
    %vm576 = vcmp.lt.s32.totalorder %v560, 16
    %vm577 = vcmp.lt.s32.totalorder %v561, 16
    %vm578 = vcmp.lt.s32.totalorder %v562, 16
    %vm579 = vcmp.lt.s32.totalorder %v563, 16
    %vm580 = vcmp.lt.s32.totalorder %v564, 16
    %vm581 = vcmp.lt.s32.totalorder %v565, 16
    %vm582 = vcmp.lt.s32.totalorder %v566, 16
    %vm583 = vcmp.lt.s32.totalorder %v567, 16
    %vm584 = vcmp.lt.s32.totalorder %v568, 16
    %vm585 = vcmp.lt.s32.totalorder %v569, 16
    %vm586 = vcmp.lt.s32.totalorder %v570, 16
    %vm587 = vcmp.lt.s32.totalorder %v571, 16
    %vm588 = vcmp.lt.s32.totalorder %v572, 16
    %v589 = vsel %vm573, %v475, 0.0
    %v590 = vsel %vm574, %v478, 0.0
    %v591 = vsel %vm575, %v481, 0.0
    %v592 = vsel %vm576, %v484, 0.0
    %v593 = vsel %vm577, %v487, 0.0
    %v594 = vsel %vm578, %v490, 0.0
    %v595 = vsel %vm579, %v493, 0.0
    %v596 = vsel %vm580, %v496, 0.0
    %v597 = vsel %vm581, %v499, 0.0
    %v598 = vsel %vm582, %v502, 0.0
    %v599 = vsel %vm583, %v505, 0.0
    %v600 = vsel %vm584, %v508, 0.0
    %v601 = vsel %vm585, %v511, 0.0
    %v602 = vsel %vm586, %v514, 0.0
    %v603 = vsel %vm587, %v517, 0.0
    %v604 = vsel %vm588, %v520, 0.0
    %v605 = vadd.f32 %v589, %v590
    %v606 = vadd.f32 %v605, %v591
    %v607 = vadd.f32 %v606, %v592
    %v608 = vadd.f32 %v607, %v593
    %v609 = vadd.f32 %v608, %v594
    %v610 = vadd.f32 %v609, %v595
    %v611 = vadd.f32 %v610, %v596
    %v612 = vadd.f32 %v611, %v597
    %v613 = vadd.f32 %v612, %v598
    %v614 = vadd.f32 %v613, %v599
    %v615 = vadd.f32 %v614, %v600
    %v616 = vadd.f32 %v615, %v601
    %v617 = vadd.f32 %v616, %v602
    %v618 = vadd.f32 %v617, %v603
    %v619 = vadd.f32 %v618, %v604
    %v620 = vrot.slane %v619, 4
    %v621 = vadd.f32 %v619, %v620
    %v622 = vrot.slane %v621, 2
    %v623 = vadd.f32 %v621, %v622
    %v624 = vrot.slane %v623, 1
    %v625 = vadd.f32 %v623, %v624
    %626 = vst [vmem:[%s11] sm:$0x1] %v625
    %v627 = vmul.f32 %v589, %v589
    %v628 = vmul.f32 %v590, %v590
    %v629 = vmul.f32 %v591, %v591
    %v630 = vmul.f32 %v592, %v592
    %v631 = vmul.f32 %v593, %v593
    %v632 = vmul.f32 %v594, %v594
    %v633 = vmul.f32 %v595, %v595
    %v634 = vmul.f32 %v596, %v596
    %v635 = vmul.f32 %v597, %v597
    %v636 = vmul.f32 %v598, %v598
    %v637 = vmul.f32 %v599, %v599
    %v638 = vmul.f32 %v600, %v600
    %v639 = vmul.f32 %v601, %v601
    %v640 = vmul.f32 %v602, %v602
    %v641 = vmul.f32 %v603, %v603
    %v642 = vmul.f32 %v604, %v604
    %v643 = vadd.f32 %v627, %v628
    %v644 = vadd.f32 %v643, %v629
    %v645 = vadd.f32 %v644, %v630
    %v646 = vadd.f32 %v645, %v631
    %v647 = vadd.f32 %v646, %v632
    %v648 = vadd.f32 %v647, %v633
    %v649 = vadd.f32 %v648, %v634
    %v650 = vadd.f32 %v649, %v635
    %v651 = vadd.f32 %v650, %v636
    %v652 = vadd.f32 %v651, %v637
    %v653 = vadd.f32 %v652, %v638
    %v654 = vadd.f32 %v653, %v639
    %v655 = vadd.f32 %v654, %v640
    %v656 = vadd.f32 %v655, %v641
    %v657 = vadd.f32 %v656, %v642
    %v658 = vrot.slane %v657, 4
    %v659 = vadd.f32 %v657, %v658
    %v660 = vrot.slane %v659, 2
    %v661 = vadd.f32 %v659, %v660
    %v662 = vrot.slane %v661, 1
    %v663 = vadd.f32 %v661, %v662
    %664 = vst [vmem:[%s12] sm:$0x1] %v663
  $region49: #{gin_forward.5} parent=0 // pred_fallthru
    _
  // Predicated region
  $region50: #{gin_forward.5} parent=0 // pred_check
    _
  $region51: #{gin_forward.5} parent=0 // pred_check_branch
    %666 = sbr.rel (0) target = $region53
  $region52: #{gin_forward.5} parent=0 // pred_region
    _
  $region53: #{gin_forward.5} parent=0 // pred_fallthru
    _
  // Predicated region
  $region54: #{gin_forward.5} parent=0 // pred_check
    _
  $region55: #{gin_forward.5} parent=0 // pred_check_branch
    %668 = sbr.rel (0) target = $region57
  $region56: #{gin_forward.5} parent=0 // pred_region
    _
  $region57: #{gin_forward.5} parent=0 // pred_fallthru
    _
  // Predicated region
  $region58: #{gin_forward.5} parent=0 // pred_check
    _
  $region59: #{gin_forward.5} parent=0 // pred_check_branch
    %670 = sbr.rel (0) target = $region61
  $region60: #{gin_forward.5} parent=0 // pred_region
    _
  $region61: #{gin_forward.5} parent=0 // pred_fallthru
    _
  // Predicated region
  $region62: #{gin_forward.5} parent=0 // pred_check
    _
  $region63: #{gin_forward.5} parent=0 // pred_check_branch
    %672 = sbr.rel (0) target = $region65
  $region64: #{gin_forward.5} parent=0 // pred_region
    _
  $region65: #{gin_forward.5} parent=0 // pred_fallthru
    _
  // Predicated region
  $region66: #{gin_forward.5} parent=0 // pred_check
    _
  $region67: #{gin_forward.5} parent=0 // pred_check_branch
    %674 = sbr.rel (0) target = $region69
  $region68: #{gin_forward.5} parent=0 // pred_region
    _
  $region69: #{gin_forward.5} parent=0 // pred_fallthru
    _
  // Predicated region
  $region70: #{gin_forward.5} parent=0 // pred_check
    _
  $region71: #{gin_forward.5} parent=0 // pred_check_branch
    %676 = sbr.rel (0) target = $region73
  $region72: #{gin_forward.5} parent=0 // pred_region
    _
  $region73: #{gin_forward.5} parent=0 // pred_fallthru
    _

// kernel: gin_forward.7
$region0: #{gin_forward.7}
  #allocation0 [shape = 'u32[]', space=smem, size = 0x4, offset = 0x4, fixed_abs, tag = 'smem constant byte address 0x4 - core index']
  #allocation1 [shape = 'u32[72,128]{1,0:T(1,128)}', space=vmem, size = 0x9000, scoped, tag = 'internal scratch']
  %s0 = inlined_call_operand.vmem [shape: f32[128,128], index: 0, kind: input, shape index: {}]
  %s1 = inlined_call_operand.vmem [shape: f32[1,128], index: 1, kind: input, shape index: {}]
  %s2 = inlined_call_operand.vmem [shape: f32[1,128], index: 2, kind: input, shape index: {}]
  %s3 = inlined_call_operand.vmem [shape: f32[1,128], index: 3, kind: input, shape index: {}]
  %s4 = inlined_call_operand.vmem [shape: f32[1,128], index: 4, kind: input, shape index: {}]
  %s5 = inlined_call_operand.vmem [shape: f32[128,128], index: 5, kind: output, shape index: {}]
  %s6 = sld [smem:[#allocation0]]
  $region30: #{gin_forward.7} parent=0
    _
  %s8 = ssub.s32 1, %s6
  %s9 = scalar_select 0, %s8, %s6
  // Predicated region
  $region2: #{gin_forward.7} parent=0 // pred_check
    _
  $region3: #{gin_forward.7} parent=0 // pred_check_branch
    %11 = sbr.rel (0) target = $region5
  $region4: #{gin_forward.7} parent=0 // pred_region
    _
  $region5: #{gin_forward.7} parent=0 // pred_fallthru
    _
  // Predicated region
  $region6: #{gin_forward.7} parent=0 // pred_check
    _
  $region7: #{gin_forward.7} parent=0 // pred_check_branch
    %13 = sbr.rel (0) target = $region9
  $region8: #{gin_forward.7} parent=0 // pred_region
    _
  $region9: #{gin_forward.7} parent=0 // pred_fallthru
    _
  // Predicated region
  $region10: #{gin_forward.7} parent=0 // pred_check
    _
  $region11: #{gin_forward.7} parent=0 // pred_check_branch
    %15 = sbr.rel (0) target = $region13
  $region12: #{gin_forward.7} parent=0 // pred_region
    _
  $region13: #{gin_forward.7} parent=0 // pred_fallthru
    _
  // Predicated region
  $region14: #{gin_forward.7} parent=0 // pred_check
    _
  $region15: #{gin_forward.7} parent=0 // pred_check_branch
    %17 = sbr.rel (0) target = $region17
  $region16: #{gin_forward.7} parent=0 // pred_region
    _
  $region17: #{gin_forward.7} parent=0 // pred_fallthru
    _
  // Predicated region
  $region18: #{gin_forward.7} parent=0 // pred_check
    _
  $region19: #{gin_forward.7} parent=0 // pred_check_branch
    %19 = sbr.rel (0) target = $region21
  $region20: #{gin_forward.7} parent=0 // pred_region
    _
  $region21: #{gin_forward.7} parent=0 // pred_fallthru
    _
  %v20 = vld [vmem:[%s0] sm:$0xff]
  %v21 = vld [vmem:[%s0 + $0x8] sm:$0xff]
  %v22 = vld [vmem:[%s0 + $0x10] sm:$0xff]
  %v23 = vld [vmem:[%s0 + $0x18] sm:$0xff]
  %v24 = vld [vmem:[%s0 + $0x20] sm:$0xff]
  %v25 = vld [vmem:[%s0 + $0x28] sm:$0xff]
  %v26 = vld [vmem:[%s0 + $0x30] sm:$0xff]
  %v27 = vld [vmem:[%s0 + $0x38] sm:$0xff]
  %v28 = vld [vmem:[%s0 + $0x40] sm:$0xff]
  %v29 = vld [vmem:[%s0 + $0x48] sm:$0xff]
  %v30 = vld [vmem:[%s0 + $0x50] sm:$0xff]
  %v31 = vld [vmem:[%s0 + $0x58] sm:$0xff]
  %v32 = vld [vmem:[%s0 + $0x60] sm:$0xff]
  %v33 = vld [vmem:[%s0 + $0x68] sm:$0xff]
  %v34 = vld [vmem:[%s0 + $0x70] sm:$0xff]
  %v35 = vld [vmem:[%s0 + $0x78] sm:$0xff]
  %v36 = vld [vmem:[%s1] sm:$0x1]
  %v38 = vperm.slane %v36, 0
  %v40 = vsub.f32 %v20, %v38
  %v41 = vsub.f32 %v21, %v38
  %v42 = vsub.f32 %v22, %v38
  %v43 = vsub.f32 %v23, %v38
  %v44 = vsub.f32 %v24, %v38
  %v45 = vsub.f32 %v25, %v38
  %v46 = vsub.f32 %v26, %v38
  %v47 = vsub.f32 %v27, %v38
  %v48 = vsub.f32 %v28, %v38
  %v49 = vsub.f32 %v29, %v38
  %v50 = vsub.f32 %v30, %v38
  %v51 = vsub.f32 %v31, %v38
  %v52 = vsub.f32 %v32, %v38
  %v53 = vsub.f32 %v33, %v38
  %v54 = vsub.f32 %v34, %v38
  %v55 = vsub.f32 %v35, %v38
  %v56 = vld [vmem:[%s2] sm:$0x1]
  %v58 = vperm.slane %v56, 0
  %v60 = vmul.f32 %v40, %v58
  %v61 = vmul.f32 %v41, %v58
  %v62 = vmul.f32 %v42, %v58
  %v63 = vmul.f32 %v43, %v58
  %v64 = vmul.f32 %v44, %v58
  %v65 = vmul.f32 %v45, %v58
  %v66 = vmul.f32 %v46, %v58
  %v67 = vmul.f32 %v47, %v58
  %v68 = vmul.f32 %v48, %v58
  %v69 = vmul.f32 %v49, %v58
  %v70 = vmul.f32 %v50, %v58
  %v71 = vmul.f32 %v51, %v58
  %v72 = vmul.f32 %v52, %v58
  %v73 = vmul.f32 %v53, %v58
  %v74 = vmul.f32 %v54, %v58
  %v75 = vmul.f32 %v55, %v58
  %v76 = vld [vmem:[%s3] sm:$0x1]
  %v78 = vperm.slane %v76, 0
  %v80 = vmul.f32 %v60, %v78
  %v81 = vmul.f32 %v61, %v78
  %v82 = vmul.f32 %v62, %v78
  %v83 = vmul.f32 %v63, %v78
  %v84 = vmul.f32 %v64, %v78
  %v85 = vmul.f32 %v65, %v78
  %v86 = vmul.f32 %v66, %v78
  %v87 = vmul.f32 %v67, %v78
  %v88 = vmul.f32 %v68, %v78
  %v89 = vmul.f32 %v69, %v78
  %v90 = vmul.f32 %v70, %v78
  %v91 = vmul.f32 %v71, %v78
  %v92 = vmul.f32 %v72, %v78
  %v93 = vmul.f32 %v73, %v78
  %v94 = vmul.f32 %v74, %v78
  %v95 = vmul.f32 %v75, %v78
  %v96 = vld [vmem:[%s4] sm:$0x1]
  %v98 = vperm.slane %v96, 0
  %v100 = vadd.f32 %v80, %v98
  %v101 = vadd.f32 %v81, %v98
  %v102 = vadd.f32 %v82, %v98
  %v103 = vadd.f32 %v83, %v98
  %v104 = vadd.f32 %v84, %v98
  %v105 = vadd.f32 %v85, %v98
  %v106 = vadd.f32 %v86, %v98
  %v107 = vadd.f32 %v87, %v98
  %v108 = vadd.f32 %v88, %v98
  %v109 = vadd.f32 %v89, %v98
  %v110 = vadd.f32 %v90, %v98
  %v111 = vadd.f32 %v91, %v98
  %v112 = vadd.f32 %v92, %v98
  %v113 = vadd.f32 %v93, %v98
  %v114 = vadd.f32 %v94, %v98
  %v115 = vadd.f32 %v95, %v98
  %v116 = vmax.f32 %v100, 0.0
  %v117 = vmax.f32 %v101, 0.0
  %v118 = vmax.f32 %v102, 0.0
  %v119 = vmax.f32 %v103, 0.0
  %v120 = vmax.f32 %v104, 0.0
  %v121 = vmax.f32 %v105, 0.0
  %v122 = vmax.f32 %v106, 0.0
  %v123 = vmax.f32 %v107, 0.0
  %v124 = vmax.f32 %v108, 0.0
  %v125 = vmax.f32 %v109, 0.0
  %v126 = vmax.f32 %v110, 0.0
  %v127 = vmax.f32 %v111, 0.0
  %v128 = vmax.f32 %v112, 0.0
  %v129 = vmax.f32 %v113, 0.0
  %v130 = vmax.f32 %v114, 0.0
  %v131 = vmax.f32 %v115, 0.0
  %132 = vst [vmem:[%s5] sm:$0xff] %v116
  %133 = vst [vmem:[%s5 + $0x8] sm:$0xff] %v117
  %134 = vst [vmem:[%s5 + $0x10] sm:$0xff] %v118
  %135 = vst [vmem:[%s5 + $0x18] sm:$0xff] %v119
  %136 = vst [vmem:[%s5 + $0x20] sm:$0xff] %v120
  %137 = vst [vmem:[%s5 + $0x28] sm:$0xff] %v121
  %138 = vst [vmem:[%s5 + $0x30] sm:$0xff] %v122
  %139 = vst [vmem:[%s5 + $0x38] sm:$0xff] %v123
  %140 = vst [vmem:[%s5 + $0x40] sm:$0xff] %v124
  %141 = vst [vmem:[%s5 + $0x48] sm:$0xff] %v125
  %142 = vst [vmem:[%s5 + $0x50] sm:$0xff] %v126
  %143 = vst [vmem:[%s5 + $0x58] sm:$0xff] %v127
  %144 = vst [vmem:[%s5 + $0x60] sm:$0xff] %v128
  %145 = vst [vmem:[%s5 + $0x68] sm:$0xff] %v129
  %146 = vst [vmem:[%s5 + $0x70] sm:$0xff] %v130
  %147 = vst [vmem:[%s5 + $0x78] sm:$0xff] %v131
  // Predicated region
  $region22: #{gin_forward.7} parent=0 // pred_check
    _
  $region23: #{gin_forward.7} parent=0 // pred_check_branch
    %149 = sbr.rel (0) target = $region25
  $region24: #{gin_forward.7} parent=0 // pred_region
    _
  $region25: #{gin_forward.7} parent=0 // pred_fallthru
    _
  // Predicated region
  $region26: #{gin_forward.7} parent=0 // pred_check
    _
  $region27: #{gin_forward.7} parent=0 // pred_check_branch
    %151 = sbr.rel (0) target = $region29
  $region28: #{gin_forward.7} parent=0 // pred_region
    _
  $region29: #{gin_forward.7} parent=0 // pred_fallthru
    _

</llo_original>
